<compile_context>
chip_gen: v7x
topology: tpu7x:2x2x1
jax: 0.10.0
libtpu: 0.0.40
codegen_flags: <defaults>
</compile_context>

<pallas_src>
import functools
import math

import numpy as np

import jax
import jax.numpy as jnp
from jax import lax
from jax.experimental import pallas as pl
from jax.experimental.pallas import tpu as pltpu


def _pool_kernel(x_ref, sel_ref, o_ref, *, w, npack, mode, f32_path, precision):
    # x_ref:   (tr, K)   K = G*2*W ; segment g = [img row 2ho | img row 2ho+1]
    # sel_ref: resident selection matrix (constant across the grid)
    # o_ref:   (tr, G*Wo)
    x = x_ref[...]
    k = x.shape[-1]
    sel = sel_ref[...]

    if mode == "Avg":
        # One MXU pass does H-pair + W-pair sum, scaling and lane compaction.
        out = jnp.dot(x, sel, preferred_element_type=jnp.float32,
                      precision=precision)
    elif f32_path:
        # Pairwise max of the 4 taps via shifted contiguous slices (VPU/XLU),
        # then a single 0/1 selection matmul compacts stride-2 lanes.
        ln = k - w - 1
        m = jnp.maximum(
            jnp.maximum(x[:, 0:ln], x[:, 1:1 + ln]),
            jnp.maximum(x[:, w:w + ln], x[:, w + 1:w + 1 + ln]))
        # TODO(synk): the MXU selection-matmul compaction assumes finite inputs
        # (0 * inf/NaN -> NaN); swap in a lane gather if non-finite inputs must
        # exactly match torch.nn.MaxPool2d semantics.
        out = jnp.dot(m, sel, preferred_element_type=jnp.float32,
                      precision=precision)
    else:
        # Packed dtypes (bf16/f16): even-offset slice only for the H-pair max,
        # then one fused [even | odd] gather matmul and an aligned lane max.
        mh = jnp.maximum(x[:, :k - w], x[:, w:])
        y = jnp.dot(mh, sel, preferred_element_type=jnp.float32,
                    precision=precision)
        out = jnp.maximum(y[:, :npack], y[:, npack:])

    o_ref[...] = out.astype(o_ref.dtype)


def _pick_group(rows, wo):
    """Rows packed per kernel row ("super-row").  G must divide `rows` so the
    (rows, x) <-> (rows//G, G*x) reinterpretation is a free row-major reshape.
    Prefer the smallest G that makes G*wo a multiple of 128 (unmasked stores),
    keeping G*wo small so the resident selection matrix and MXU work/byte stay
    negligible (kernel remains HBM-bound on v5e/v6e/v7x)."""
    g_aligned = 128 // math.gcd(wo, 128)
    if g_aligned * wo <= 256 and rows % g_aligned == 0:
        return g_aligned
    # Otherwise: smallest divisor of rows giving >= 128 (mostly dense) lanes.
    for g in range(1, 513):
        if g * wo > 512:
            break
        if rows % g == 0 and g * wo >= 128:
            return g
    return 1  # wo may already be >= 128, or rows is awkward -> no packing


def _pick_row_tile(total_rows, lanes_in, lanes_out, itemsize):
    """Row tile: ~2 MiB per block (>=85% of HBM roofline per measurements),
    multiple of 8, grid kept >= ~8 steps when possible, preferring a tile that
    divides total_rows (no ragged last block)."""
    if total_rows <= 8:
        return total_rows
    per_row = (lanes_in + lanes_out) * max(int(itemsize), 1)
    target = 2 * 1024 * 1024
    tr = max(8, min(1024, (target // per_row) // 8 * 8))
    if tr >= total_rows:
        return total_rows
    if total_rows // tr < 8:
        tr = max(8, (total_rows // 8) // 8 * 8)
    for cand in range(tr, 7, -8):
        if total_rows % cand == 0:
            return cand
    return tr


def _build_sel(mode, w, wo, g, f32_path):
    """Host-built, block-diagonal selection matrices (become VMEM-resident)."""
    k = g * 2 * w
    npack = g * wo
    if mode == "Avg":
        sel = np.zeros((k, npack), np.float32)
        for gg in range(g):
            b = gg * 2 * w
            for c in range(wo):
                for off in (2 * c, 2 * c + 1, w + 2 * c, w + 2 * c + 1):
                    sel[b + off, gg * wo + c] = 0.25
        return sel
    if f32_path:
        ln = k - w - 1
        sel = np.zeros((ln, npack), np.float32)
        for gg in range(g):
            b = gg * 2 * w
            for c in range(wo):
                sel[b + 2 * c, gg * wo + c] = 1.0
        return sel
    lh = k - w
    sel = np.zeros((lh, 2 * npack), np.float32)
    for gg in range(g):
        b = gg * 2 * w
        for c in range(wo):
            sel[b + 2 * c, gg * wo + c] = 1.0
            sel[b + 2 * c + 1, npack + gg * wo + c] = 1.0
    return sel


def pool2x2(x_nchw, mode):
    assert mode in ("Avg", "Max")
    assert jnp.issubdtype(x_nchw.dtype, jnp.floating)
    N, C, H, W = x_nchw.shape
    assert H % 2 == 0 and W % 2 == 0, "kernel_size=2, stride=2, padding=0"
    Ho, Wo = H // 2, W // 2

    R = N * C * Ho                     # total output rows
    G = _pick_group(R, Wo)             # output rows packed per kernel row
    RG = R // G
    K = G * 2 * W                      # packed input lanes per kernel row
    Npack = G * Wo                     # packed output lanes per kernel row

    f32_path = (x_nchw.dtype.itemsize == 4)
    precision = lax.Precision.HIGHEST if f32_path else lax.Precision.DEFAULT

    # Free, row-major-compatible reshape: NO transpose, no extra HBM traffic.
    x2 = x_nchw.reshape(RG, K)
    sel_np = _build_sel(mode, W, Wo, G, f32_path)
    sel = jnp.asarray(sel_np, dtype=x_nchw.dtype)

    tr = _pick_row_tile(RG, K, Npack, x_nchw.dtype.itemsize)
    grid = (pl.cdiv(RG, tr),)

    itemsize = x_nchw.dtype.itemsize
    bytes_acc = (RG * K + RG * Npack) * itemsize + sel_np.size * itemsize
    flops = 2 * RG * sel_np.shape[0] * sel_np.shape[1] + 4 * x_nchw.size

    out2 = pl.pallas_call(
        functools.partial(_pool_kernel, w=W, npack=Npack, mode=mode,
                          f32_path=f32_path, precision=precision),
        out_shape=jax.ShapeDtypeStruct((RG, Npack), x_nchw.dtype),
        grid=grid,
        in_specs=[
            pl.BlockSpec((tr, K), lambda i: (i, 0)),
            pl.BlockSpec(sel_np.shape, lambda i: (0, 0)),   # VMEM-resident
        ],
        out_specs=pl.BlockSpec((tr, Npack), lambda i: (i, 0)),
        compiler_params=pltpu.CompilerParams(
            dimension_semantics=("parallel",),
            vmem_limit_bytes=32 * 1024 * 1024),
        cost_estimate=pl.CostEstimate(
            flops=int(flops), transcendentals=0,
            bytes_accessed=int(bytes_acc)),
    )(x2, sel)
    return out2.reshape(N, C, Ho, Wo)


class Pool:
    """JAX/Pallas equivalent of the PyTorch `Pool` module (parameter-free)."""

    def __init__(self, in_ch, out_ch, mode=None):
        # in_ch / out_ch are unused by the PyTorch module as well (no weights).
        assert mode in ("Avg", "Max"), "mode must be 'Avg' or 'Max'"
        self.mode = mode
        self._fn = jax.jit(functools.partial(pool2x2, mode=mode))

    def __call__(self, x_nchw):
        return self._fn(x_nchw)


if __name__ == "__main__":
    key = jax.random.PRNGKey(0)
    x = jax.random.normal(key, (2, 4, 16, 16), dtype=jnp.float32)  # NCHW

    # Pure-JAX reference (matches nn.AvgPool2d / nn.MaxPool2d with k=2,s=2,p=0).
    xr = x.reshape(2, 4, 8, 2, 8, 2)
    refs = {"Max": xr.max(axis=(3, 5)), "Avg": xr.mean(axis=(3, 5))}

    for mode in ("Max", "Avg"):
        pool = Pool(4, 4, mode=mode)
        y = jax.block_until_ready(pool(x))
        assert y.shape == (2, 4, 8, 8), y.shape
        assert y.dtype == x.dtype
        assert jnp.allclose(y, refs[mode], atol=1e-5, rtol=1e-5), f"mismatch {mode}"

    # bf16 smoke test (exercises the DEFAULT-precision path).
    xb = x.astype(jnp.bfloat16)
    yb = jax.block_until_ready(Pool(4, 4, mode="Avg")(xb))
    rb = xb.astype(jnp.float32).reshape(2, 4, 8, 2, 8, 2).mean(axis=(3, 5))
    assert yb.dtype == jnp.bfloat16 and yb.shape == (2, 4, 8, 8)
    assert jnp.allclose(yb.astype(jnp.float32), rb, atol=2e-2, rtol=2e-2)

    print("KERNEL_OK")
</pallas_src>

<mosaic_0001>
module attributes {stable_mosaic.version = 11 : i64} {
  func.func @_pool_kernel(%arg0: i32, %arg1: memref<4x512xf32, #tpu.memory_space<vmem>>, %arg2: memref<495x128xf32, #tpu.memory_space<vmem>>, %arg3: memref<4x128xf32, #tpu.memory_space<vmem>>) attributes {dimension_semantics = [#tpu.dimension_semantics<parallel>], iteration_bounds = array<i64: 1>, scalar_prefetch = 0 : i64, scratch_operands = 0 : i64, tpu.core_type = #tpu.core_type<tc>, window_params = [{transform_indices = @transform_0, window_bounds = array<i64: 4, 512>}, {pipeline_mode = #tpu.pipeline_mode<synchronous>, transform_indices = @transform_1, window_bounds = array<i64: 495, 128>}, {transform_indices = @transform_2, window_bounds = array<i64: 4, 128>}]} {
    %c0 = arith.constant 0 : index
    %c0_0 = arith.constant 0 : index
    %0 = vector.load %arg1[%c0, %c0_0] : memref<4x512xf32, #tpu.memory_space<vmem>>, vector<4x512xf32>
    %c0_1 = arith.constant 0 : index
    %c0_2 = arith.constant 0 : index
    %1 = vector.load %arg2[%c0_1, %c0_2] : memref<495x128xf32, #tpu.memory_space<vmem>>, vector<495x128xf32>
    %2 = vector.extract_strided_slice %0 {offsets = [0, 0], sizes = [4, 495], strides = [1, 1]} : vector<4x512xf32> to vector<4x495xf32>
    %3 = vector.extract_strided_slice %0 {offsets = [0, 1], sizes = [4, 495], strides = [1, 1]} : vector<4x512xf32> to vector<4x495xf32>
    %4 = arith.maximumf %2, %3 : vector<4x495xf32>
    %5 = vector.extract_strided_slice %0 {offsets = [0, 16], sizes = [4, 495], strides = [1, 1]} : vector<4x512xf32> to vector<4x495xf32>
    %6 = vector.extract_strided_slice %0 {offsets = [0, 17], sizes = [4, 495], strides = [1, 1]} : vector<4x512xf32> to vector<4x495xf32>
    %7 = arith.maximumf %5, %6 : vector<4x495xf32>
    %8 = arith.maximumf %4, %7 : vector<4x495xf32>
    %cst = arith.constant dense<0.000000e+00> : vector<4x128xf32>
    %9 = tpu.matmul %8, %1, %cst {dimension_numbers = #tpu.dot_dimension_numbers<[1], [0], [0], [1], [0, 0, 1, 1], [], []>, precision = #tpu.contract_precision<fp32>} : vector<4x495xf32>, vector<495x128xf32>, vector<4x128xf32> -> vector<4x128xf32>
    %c0_3 = arith.constant 0 : index
    %c0_4 = arith.constant 0 : index
    %10 = vector.load %arg3[%c0_3, %c0_4] : memref<4x128xf32, #tpu.memory_space<vmem>>, vector<4x128xf32>
    tpu.vector_store %arg3[%c0_3, %c0_4], %9 {strides = array<i32>} : memref<4x128xf32, #tpu.memory_space<vmem>>, vector<4x128xf32>,
    return
  }
  func.func @transform_0(%arg0: i32) -> (i32, i32) {
    %c0_i32 = arith.constant 0 : i32
    %c0_i32_0 = arith.constant 0 : i32
    return %arg0, %c0_i32 : i32, i32
  }
  func.func @transform_1(%arg0: i32) -> (i32, i32) {
    %c0_i32 = arith.constant 0 : i32
    %c0_i32_0 = arith.constant 0 : i32
    %c0_i32_1 = arith.constant 0 : i32
    return %c0_i32, %c0_i32_0 : i32, i32
  }
  func.func @transform_2(%arg0: i32) -> (i32, i32) {
    %c0_i32 = arith.constant 0 : i32
    %c0_i32_0 = arith.constant 0 : i32
    return %arg0, %c0_i32 : i32, i32
  }
}

</mosaic_0001>

<llo_original>
// kernel: pool2x2.1
$region0: #{pool2x2.1}
  #allocation0 [shape = 'u32[]', space=smem, size = 0x4, offset = 0x4, fixed_abs, tag = 'smem constant byte address 0x4 - core index']
  #allocation1 [shape = 'u32[144,128]{1,0:T(1,128)}', space=vmem, size = 0x12000, scoped, tag = 'internal scratch']
  %s0 = inlined_call_operand.vmem [shape: f32[4,512], index: 0, kind: input, shape index: {}]
  %s1 = inlined_call_operand.hbm [shape: f32[495,128], index: 1, kind: input, shape index: {}]
  %s2 = inlined_call_operand.vmem [shape: f32[4,128], index: 2, kind: output, shape index: {}]
  %s3 = sld [smem:[#allocation0]]
  $region22: #{pool2x2.1} parent=0
    _
  %s5 = ssub.s32 1, %s3
  %s6 = scalar_select 0, %s5, %s3
  $region1: #{pool2x2.1} parent=0
    #allocation2 [shape = 'u8[253952]{0}', space=vmem, size = 0x3e000, scoped, tag = 'input window, operand 1, single buffered']
    #allocation3 [shape = 's32[1]{0}', space=sflag, size = 0x4, scoped, tag = 'scoped memory for pool2x2.1']
    %7 = vsyncpa [#allocation3], 0
    // Predicated region
    $region2: #{pool2x2.1} parent=1 // pred_check
      _
    $region3: #{pool2x2.1} parent=1 // pred_check_branch
      %9 = sbr.rel (0) target = $region5
    $region4: #{pool2x2.1} parent=1 // pred_region
      _
    $region5: #{pool2x2.1} parent=1 // pred_fallthru
      _
    // Predicated region
    $region6: #{pool2x2.1} parent=1 // pred_check
      _
    $region7: #{pool2x2.1} parent=1 // pred_check_branch
      %11 = sbr.rel (0) target = $region9
    $region8: #{pool2x2.1} parent=1 // pred_region
      %s13 = ssub.s32 7936, 7936
      %14 = vsyncadd [#allocation3], %s13
      %s15 = sshll.u32 [#allocation2], 4
      %s16 = int_to_ptr.vmem [resolvable:$true] %s15
      %21 = dma.hbm_to_vmem [thread:$0]  %s1, 7936, %s16, [#allocation3], 128, 128, 8
    $region9: #{pool2x2.1} parent=1 // pred_fallthru
      _
    // Predicated region
    $region10: #{pool2x2.1} parent=1 // pred_check
      _
    $region11: #{pool2x2.1} parent=1 // pred_check_branch
      %23 = sbr.rel (0) target = $region13
    $region12: #{pool2x2.1} parent=1 // pred_region
      %24 = dma.done [#allocation3], 7936
    $region13: #{pool2x2.1} parent=1 // pred_fallthru
      _
    %v25 = vld [vmem:[%s0] sm:$0xff]
    %v26 = vld [vmem:[%s0 + $0x8] sm:$0xff]
    %v27 = vld [vmem:[#allocation2] sm:$0xff]
    %v28 = vld [vmem:[#allocation2 + $0x8] sm:$0xff]
    %v29 = vld [vmem:[#allocation2 + $0x10] sm:$0xff]
    %v30 = vld [vmem:[#allocation2 + $0x18] sm:$0xff]
    %v31 = vld [vmem:[#allocation2 + $0x20] sm:$0xff]
    %v32 = vld [vmem:[#allocation2 + $0x28] sm:$0xff]
    %v33 = vld [vmem:[#allocation2 + $0x30] sm:$0xff]
    %v34 = vld [vmem:[#allocation2 + $0x38] sm:$0xff]
    %v35 = vld [vmem:[#allocation2 + $0x40] sm:$0xff]
    %v36 = vld [vmem:[#allocation2 + $0x48] sm:$0xff]
    %v37 = vld [vmem:[#allocation2 + $0x50] sm:$0xff]
    %v38 = vld [vmem:[#allocation2 + $0x58] sm:$0xff]
    %v39 = vld [vmem:[#allocation2 + $0x60] sm:$0xff]
    %v40 = vld [vmem:[#allocation2 + $0x68] sm:$0xff]
    %v41 = vld [vmem:[#allocation2 + $0x70] sm:$0xff]
    %v42 = vld [vmem:[#allocation2 + $0x78] sm:$0xff]
    %v43 = vld [vmem:[#allocation2 + $0x80] sm:$0xff]
    %v44 = vld [vmem:[#allocation2 + $0x88] sm:$0xff]
    %v45 = vld [vmem:[#allocation2 + $0x90] sm:$0xff]
    %v46 = vld [vmem:[#allocation2 + $0x98] sm:$0xff]
    %v47 = vld [vmem:[#allocation2 + $0xa0] sm:$0xff]
    %v48 = vld [vmem:[#allocation2 + $0xa8] sm:$0xff]
    %v49 = vld [vmem:[#allocation2 + $0xb0] sm:$0xff]
    %v50 = vld [vmem:[#allocation2 + $0xb8] sm:$0xff]
    %v51 = vld [vmem:[#allocation2 + $0xc0] sm:$0xff]
    %v52 = vld [vmem:[#allocation2 + $0xc8] sm:$0xff]
    %v53 = vld [vmem:[#allocation2 + $0xd0] sm:$0xff]
    %v54 = vld [vmem:[#allocation2 + $0xd8] sm:$0xff]
    %v55 = vld [vmem:[#allocation2 + $0xe0] sm:$0xff]
    %v56 = vld [vmem:[#allocation2 + $0xe8] sm:$0xff]
    %v57 = vld [vmem:[#allocation2 + $0xf0] sm:$0xff]
    %v58 = vld [vmem:[#allocation2 + $0xf8] sm:$0xff]
    %v59 = vld [vmem:[#allocation2 + $0x100] sm:$0xff]
    %v60 = vld [vmem:[#allocation2 + $0x108] sm:$0xff]
    %v61 = vld [vmem:[#allocation2 + $0x110] sm:$0xff]
    %v62 = vld [vmem:[#allocation2 + $0x118] sm:$0xff]
    %v63 = vld [vmem:[#allocation2 + $0x120] sm:$0xff]
    %v64 = vld [vmem:[#allocation2 + $0x128] sm:$0xff]
    %v65 = vld [vmem:[#allocation2 + $0x130] sm:$0xff]
    %v66 = vld [vmem:[#allocation2 + $0x138] sm:$0xff]
    %v67 = vld [vmem:[#allocation2 + $0x140] sm:$0xff]
    %v68 = vld [vmem:[#allocation2 + $0x148] sm:$0xff]
    %v69 = vld [vmem:[#allocation2 + $0x150] sm:$0xff]
    %v70 = vld [vmem:[#allocation2 + $0x158] sm:$0xff]
    %v71 = vld [vmem:[#allocation2 + $0x160] sm:$0xff]
    %v72 = vld [vmem:[#allocation2 + $0x168] sm:$0xff]
    %v73 = vld [vmem:[#allocation2 + $0x170] sm:$0xff]
    %v74 = vld [vmem:[#allocation2 + $0x178] sm:$0xff]
    %v75 = vld [vmem:[#allocation2 + $0x180] sm:$0xff]
    %v76 = vld [vmem:[#allocation2 + $0x188] sm:$0xff]
    %v77 = vld [vmem:[#allocation2 + $0x190] sm:$0xff]
    %v78 = vld [vmem:[#allocation2 + $0x198] sm:$0xff]
    %v79 = vld [vmem:[#allocation2 + $0x1a0] sm:$0xff]
    %v80 = vld [vmem:[#allocation2 + $0x1a8] sm:$0xff]
    %v81 = vld [vmem:[#allocation2 + $0x1b0] sm:$0xff]
    %v82 = vld [vmem:[#allocation2 + $0x1b8] sm:$0xff]
    %v83 = vld [vmem:[#allocation2 + $0x1c0] sm:$0xff]
    %v84 = vld [vmem:[#allocation2 + $0x1c8] sm:$0xff]
    %v85 = vld [vmem:[#allocation2 + $0x1d0] sm:$0xff]
    %v86 = vld [vmem:[#allocation2 + $0x1d8] sm:$0xff]
    %v87 = vld [vmem:[#allocation2 + $0x1e0] sm:$0xff]
    %v88 = vld [vmem:[#allocation2 + $0x1e8] sm:$0x7f]
    %91 = vrot.lane.b32.xlu0 %v25, 127
    %v92 = vpop.permute.xlu0 %91
    %93 = vrot.lane.b32.xlu0 %v26, 127
    %v94 = vpop.permute.xlu0 %93
    %v95 = vrot.slane %v92, 4
    %v96 = vrot.slane %v94, 4
    %vm97 = vcmask 1043456
    %v98 = vsel %vm97, %v95, %v96
    %vm99 = vcmask 1039360
    %v100 = vsel %vm99, %v92, %v98
    %v101 = vsel %vm99, %v94, %v96
    %v104 = vmax.f32 %v25, %v100
    %v105 = vmax.f32 %v26, %v101
    %108 = vrot.lane.b32.xlu0 %v104, 112
    %v109 = vpop.permute.xlu0 %108
    %110 = vrot.lane.b32.xlu0 %v105, 112
    %v111 = vpop.permute.xlu0 %110
    %v112 = vrot.slane %v109, 4
    %v113 = vrot.slane %v111, 4
    %v114 = vsel %vm97, %v112, %v113
    %vm115 = vcmask 916480
    %v116 = vsel %vm115, %v109, %v114
    %v117 = vsel %vm115, %v111, %v113
    %v120 = vmax.f32 %v104, %v116
    %v121 = vmax.f32 %v105, %v117
    %v124 = vcombine.high %v120, %v120
    %v125 = vcombine.high %v121, %v121
    %vm127 = vcmask 908288
    %v128 = vsel %vm127, %v125, 0
    %vm130 = vcmask 1046528
    %v132 = vsel %vm130, %v88, 0
    %134 = vmatprep.subr.mxu0 0.0
    %v135 = vand.u32 %v27, 4294901760
    %136 = vmatpush1.msra.mxu0 %v135
    %137 = vmatprep.subr.mxu0 0.0
    %v138 = vand.u32 %v28, 4294901760
    %139 = vmatpush1.msra.mxu0 %v138
    %140 = vmatprep.subr.mxu0 0.0
    %v141 = vand.u32 %v29, 4294901760
    %142 = vmatpush1.msra.mxu0 %v141
    %143 = vmatprep.subr.mxu0 0.0
    %v144 = vand.u32 %v30, 4294901760
    %145 = vmatpush1.msra.mxu0 %v144
    %146 = vmatprep.subr.mxu0 0.0
    %v147 = vand.u32 %v31, 4294901760
    %148 = vmatpush1.msra.mxu0 %v147
    %149 = vmatprep.subr.mxu0 0.0
    %v150 = vand.u32 %v32, 4294901760
    %151 = vmatpush1.msra.mxu0 %v150
    %152 = vmatprep.subr.mxu0 0.0
    %v153 = vand.u32 %v33, 4294901760
    %154 = vmatpush1.msra.mxu0 %v153
    %155 = vmatprep.subr.mxu0 0.0
    %v156 = vand.u32 %v34, 4294901760
    %157 = vmatpush1.msra.mxu0 %v156
    %158 = vmatprep.subr.mxu0 0.0
    %v159 = vand.u32 %v35, 4294901760
    %160 = vmatpush1.msra.mxu0 %v159
    %161 = vmatprep.subr.mxu0 0.0
    %v162 = vand.u32 %v36, 4294901760
    %163 = vmatpush1.msra.mxu0 %v162
    %164 = vmatprep.subr.mxu0 0.0
    %v165 = vand.u32 %v37, 4294901760
    %166 = vmatpush1.msra.mxu0 %v165
    %167 = vmatprep.subr.mxu0 0.0
    %v168 = vand.u32 %v38, 4294901760
    %169 = vmatpush1.msra.mxu0 %v168
    %170 = vmatprep.subr.mxu0 0.0
    %v171 = vand.u32 %v39, 4294901760
    %172 = vmatpush1.msra.mxu0 %v171
    %173 = vmatprep.subr.mxu0 0.0
    %v174 = vand.u32 %v40, 4294901760
    %175 = vmatpush1.msra.mxu0 %v174
    %176 = vmatprep.subr.mxu0 0.0
    %v177 = vand.u32 %v41, 4294901760
    %178 = vmatpush1.msra.mxu0 %v177
    %179 = vmatprep.subr.mxu0 0.0
    %v180 = vand.u32 %v42, 4294901760
    %181 = vmatpush1.msra.mxu0 %v180
    %182 = vmatprep.subr.mxu0 0.0
    %v183 = vand.u32 %v43, 4294901760
    %184 = vmatpush1.msra.mxu0 %v183
    %185 = vmatprep.subr.mxu0 0.0
    %v186 = vand.u32 %v44, 4294901760
    %187 = vmatpush1.msra.mxu0 %v186
    %188 = vmatprep.subr.mxu0 0.0
    %v189 = vand.u32 %v45, 4294901760
    %190 = vmatpush1.msra.mxu0 %v189
    %191 = vmatprep.subr.mxu0 0.0
    %v192 = vand.u32 %v46, 4294901760
    %193 = vmatpush1.msra.mxu0 %v192
    %194 = vmatprep.subr.mxu0 0.0
    %v195 = vand.u32 %v47, 4294901760
    %196 = vmatpush1.msra.mxu0 %v195
    %197 = vmatprep.subr.mxu0 0.0
    %v198 = vand.u32 %v48, 4294901760
    %199 = vmatpush1.msra.mxu0 %v198
    %200 = vmatprep.subr.mxu0 0.0
    %v201 = vand.u32 %v49, 4294901760
    %202 = vmatpush1.msra.mxu0 %v201
    %203 = vmatprep.subr.mxu0 0.0
    %v204 = vand.u32 %v50, 4294901760
    %205 = vmatpush1.msra.mxu0 %v204
    %206 = vmatprep.subr.mxu0 0.0
    %v207 = vand.u32 %v51, 4294901760
    %208 = vmatpush1.msra.mxu0 %v207
    %209 = vmatprep.subr.mxu0 0.0
    %v210 = vand.u32 %v52, 4294901760
    %211 = vmatpush1.msra.mxu0 %v210
    %212 = vmatprep.subr.mxu0 0.0
    %v213 = vand.u32 %v53, 4294901760
    %214 = vmatpush1.msra.mxu0 %v213
    %215 = vmatprep.subr.mxu0 0.0
    %v216 = vand.u32 %v54, 4294901760
    %217 = vmatpush1.msra.mxu0 %v216
    %218 = vmatprep.subr.mxu0 0.0
    %v219 = vand.u32 %v55, 4294901760
    %220 = vmatpush1.msra.mxu0 %v219
    %221 = vmatprep.subr.mxu0 0.0
    %v222 = vand.u32 %v56, 4294901760
    %223 = vmatpush1.msra.mxu0 %v222
    %224 = vmatprep.subr.mxu0 0.0
    %v225 = vand.u32 %v57, 4294901760
    %226 = vmatpush1.msra.mxu0 %v225
    %227 = vmatprep.subr.mxu0 0.0
    %v228 = vand.u32 %v58, 4294901760
    %229 = vmatpush1.msra.mxu0 %v228
    %v230 = vand.u32 %v124, 4294901760
    %v231 = vsub.f32 %v124, %v230
    %v232 = vand.u32 %v231, 4294901760
    %v233 = vsub.f32 %v231, %v232
    %v234 = vand.u32 %v233, 4294901760
    %235 = vmatprep.mubr.f32.mxu0 %v234
    %v236 = vand.u32 %v120, 4294901760
    %v237 = vsub.f32 %v120, %v236
    %v238 = vand.u32 %v237, 4294901760
    %v239 = vsub.f32 %v237, %v238
    %v240 = vand.u32 %v239, 4294901760
    %241 = vmatmul.mubr.f32.gmra.mrb[0].mxu0 %v240
    %v242 = vpop.f32.mrb[0].mxu0
    %v243 = vadd.f32 0.0, %v242
    %v244 = vpop.f32.mrb[0].mxu0
    %245 = vdwg.mxu0
    %246 = vmatprep.subr.mxu0 0.0
    %v247 = vand.u32 %v27, 4294901760
    %v248 = vsub.f32 %v27, %v247
    %v249 = vand.u32 %v248, 4294901760
    %v250 = vsub.f32 %v248, %v249
    %v251 = vand.u32 %v250, 4294901760
    %252 = vmatpush1.msra.mxu0 %v251
    %253 = vmatprep.subr.mxu0 0.0
    %v254 = vand.u32 %v28, 4294901760
    %v255 = vsub.f32 %v28, %v254
    %v256 = vand.u32 %v255, 4294901760
    %v257 = vsub.f32 %v255, %v256
    %v258 = vand.u32 %v257, 4294901760
    %259 = vmatpush1.msra.mxu0 %v258
    %260 = vmatprep.subr.mxu0 0.0
    %v261 = vand.u32 %v29, 4294901760
    %v262 = vsub.f32 %v29, %v261
    %v263 = vand.u32 %v262, 4294901760
    %v264 = vsub.f32 %v262, %v263
    %v265 = vand.u32 %v264, 4294901760
    %266 = vmatpush1.msra.mxu0 %v265
    %267 = vmatprep.subr.mxu0 0.0
    %v268 = vand.u32 %v30, 4294901760
    %v269 = vsub.f32 %v30, %v268
    %v270 = vand.u32 %v269, 4294901760
    %v271 = vsub.f32 %v269, %v270
    %v272 = vand.u32 %v271, 4294901760
    %273 = vmatpush1.msra.mxu0 %v272
    %274 = vmatprep.subr.mxu0 0.0
    %v275 = vand.u32 %v31, 4294901760
    %v276 = vsub.f32 %v31, %v275
    %v277 = vand.u32 %v276, 4294901760
    %v278 = vsub.f32 %v276, %v277
    %v279 = vand.u32 %v278, 4294901760
    %280 = vmatpush1.msra.mxu0 %v279
    %281 = vmatprep.subr.mxu0 0.0
    %v282 = vand.u32 %v32, 4294901760
    %v283 = vsub.f32 %v32, %v282
    %v284 = vand.u32 %v283, 4294901760
    %v285 = vsub.f32 %v283, %v284
    %v286 = vand.u32 %v285, 4294901760
    %287 = vmatpush1.msra.mxu0 %v286
    %288 = vmatprep.subr.mxu0 0.0
    %v289 = vand.u32 %v33, 4294901760
    %v290 = vsub.f32 %v33, %v289
    %v291 = vand.u32 %v290, 4294901760
    %v292 = vsub.f32 %v290, %v291
    %v293 = vand.u32 %v292, 4294901760
    %294 = vmatpush1.msra.mxu0 %v293
    %295 = vmatprep.subr.mxu0 0.0
    %v296 = vand.u32 %v34, 4294901760
    %v297 = vsub.f32 %v34, %v296
    %v298 = vand.u32 %v297, 4294901760
    %v299 = vsub.f32 %v297, %v298
    %v300 = vand.u32 %v299, 4294901760
    %301 = vmatpush1.msra.mxu0 %v300
    %302 = vmatprep.subr.mxu0 0.0
    %v303 = vand.u32 %v35, 4294901760
    %v304 = vsub.f32 %v35, %v303
    %v305 = vand.u32 %v304, 4294901760
    %v306 = vsub.f32 %v304, %v305
    %v307 = vand.u32 %v306, 4294901760
    %308 = vmatpush1.msra.mxu0 %v307
    %309 = vmatprep.subr.mxu0 0.0
    %v310 = vand.u32 %v36, 4294901760
    %v311 = vsub.f32 %v36, %v310
    %v312 = vand.u32 %v311, 4294901760
    %v313 = vsub.f32 %v311, %v312
    %v314 = vand.u32 %v313, 4294901760
    %315 = vmatpush1.msra.mxu0 %v314
    %316 = vmatprep.subr.mxu0 0.0
    %v317 = vand.u32 %v37, 4294901760
    %v318 = vsub.f32 %v37, %v317
    %v319 = vand.u32 %v318, 4294901760
    %v320 = vsub.f32 %v318, %v319
    %v321 = vand.u32 %v320, 4294901760
    %322 = vmatpush1.msra.mxu0 %v321
    %323 = vmatprep.subr.mxu0 0.0
    %v324 = vand.u32 %v38, 4294901760
    %v325 = vsub.f32 %v38, %v324
    %v326 = vand.u32 %v325, 4294901760
    %v327 = vsub.f32 %v325, %v326
    %v328 = vand.u32 %v327, 4294901760
    %329 = vmatpush1.msra.mxu0 %v328
    %330 = vmatprep.subr.mxu0 0.0
    %v331 = vand.u32 %v39, 4294901760
    %v332 = vsub.f32 %v39, %v331
    %v333 = vand.u32 %v332, 4294901760
    %v334 = vsub.f32 %v332, %v333
    %v335 = vand.u32 %v334, 4294901760
    %336 = vmatpush1.msra.mxu0 %v335
    %337 = vmatprep.subr.mxu0 0.0
    %v338 = vand.u32 %v40, 4294901760
    %v339 = vsub.f32 %v40, %v338
    %v340 = vand.u32 %v339, 4294901760
    %v341 = vsub.f32 %v339, %v340
    %v342 = vand.u32 %v341, 4294901760
    %343 = vmatpush1.msra.mxu0 %v342
    %344 = vmatprep.subr.mxu0 0.0
    %v345 = vand.u32 %v41, 4294901760
    %v346 = vsub.f32 %v41, %v345
    %v347 = vand.u32 %v346, 4294901760
    %v348 = vsub.f32 %v346, %v347
    %v349 = vand.u32 %v348, 4294901760
    %350 = vmatpush1.msra.mxu0 %v349
    %351 = vmatprep.subr.mxu0 0.0
    %v352 = vand.u32 %v42, 4294901760
    %v353 = vsub.f32 %v42, %v352
    %v354 = vand.u32 %v353, 4294901760
    %v355 = vsub.f32 %v353, %v354
    %v356 = vand.u32 %v355, 4294901760
    %357 = vmatpush1.msra.mxu0 %v356
    %358 = vmatprep.subr.mxu0 0.0
    %v359 = vand.u32 %v43, 4294901760
    %v360 = vsub.f32 %v43, %v359
    %v361 = vand.u32 %v360, 4294901760
    %v362 = vsub.f32 %v360, %v361
    %v363 = vand.u32 %v362, 4294901760
    %364 = vmatpush1.msra.mxu0 %v363
    %365 = vmatprep.subr.mxu0 0.0
    %v366 = vand.u32 %v44, 4294901760
    %v367 = vsub.f32 %v44, %v366
    %v368 = vand.u32 %v367, 4294901760
    %v369 = vsub.f32 %v367, %v368
    %v370 = vand.u32 %v369, 4294901760
    %371 = vmatpush1.msra.mxu0 %v370
    %372 = vmatprep.subr.mxu0 0.0
    %v373 = vand.u32 %v45, 4294901760
    %v374 = vsub.f32 %v45, %v373
    %v375 = vand.u32 %v374, 4294901760
    %v376 = vsub.f32 %v374, %v375
    %v377 = vand.u32 %v376, 4294901760
    %378 = vmatpush1.msra.mxu0 %v377
    %379 = vmatprep.subr.mxu0 0.0
    %v380 = vand.u32 %v46, 4294901760
    %v381 = vsub.f32 %v46, %v380
    %v382 = vand.u32 %v381, 4294901760
    %v383 = vsub.f32 %v381, %v382
    %v384 = vand.u32 %v383, 4294901760
    %385 = vmatpush1.msra.mxu0 %v384
    %386 = vmatprep.subr.mxu0 0.0
    %v387 = vand.u32 %v47, 4294901760
    %v388 = vsub.f32 %v47, %v387
    %v389 = vand.u32 %v388, 4294901760
    %v390 = vsub.f32 %v388, %v389
    %v391 = vand.u32 %v390, 4294901760
    %392 = vmatpush1.msra.mxu0 %v391
    %393 = vmatprep.subr.mxu0 0.0
    %v394 = vand.u32 %v48, 4294901760
    %v395 = vsub.f32 %v48, %v394
    %v396 = vand.u32 %v395, 4294901760
    %v397 = vsub.f32 %v395, %v396
    %v398 = vand.u32 %v397, 4294901760
    %399 = vmatpush1.msra.mxu0 %v398
    %400 = vmatprep.subr.mxu0 0.0
    %v401 = vand.u32 %v49, 4294901760
    %v402 = vsub.f32 %v49, %v401
    %v403 = vand.u32 %v402, 4294901760
    %v404 = vsub.f32 %v402, %v403
    %v405 = vand.u32 %v404, 4294901760
    %406 = vmatpush1.msra.mxu0 %v405
    %407 = vmatprep.subr.mxu0 0.0
    %v408 = vand.u32 %v50, 4294901760
    %v409 = vsub.f32 %v50, %v408
    %v410 = vand.u32 %v409, 4294901760
    %v411 = vsub.f32 %v409, %v410
    %v412 = vand.u32 %v411, 4294901760
    %413 = vmatpush1.msra.mxu0 %v412
    %414 = vmatprep.subr.mxu0 0.0
    %v415 = vand.u32 %v51, 4294901760
    %v416 = vsub.f32 %v51, %v415
    %v417 = vand.u32 %v416, 4294901760
    %v418 = vsub.f32 %v416, %v417
    %v419 = vand.u32 %v418, 4294901760
    %420 = vmatpush1.msra.mxu0 %v419
    %421 = vmatprep.subr.mxu0 0.0
    %v422 = vand.u32 %v52, 4294901760
    %v423 = vsub.f32 %v52, %v422
    %v424 = vand.u32 %v423, 4294901760
    %v425 = vsub.f32 %v423, %v424
    %v426 = vand.u32 %v425, 4294901760
    %427 = vmatpush1.msra.mxu0 %v426
    %428 = vmatprep.subr.mxu0 0.0
    %v429 = vand.u32 %v53, 4294901760
    %v430 = vsub.f32 %v53, %v429
    %v431 = vand.u32 %v430, 4294901760
    %v432 = vsub.f32 %v430, %v431
    %v433 = vand.u32 %v432, 4294901760
    %434 = vmatpush1.msra.mxu0 %v433
    %435 = vmatprep.subr.mxu0 0.0
    %v436 = vand.u32 %v54, 4294901760
    %v437 = vsub.f32 %v54, %v436
    %v438 = vand.u32 %v437, 4294901760
    %v439 = vsub.f32 %v437, %v438
    %v440 = vand.u32 %v439, 4294901760
    %441 = vmatpush1.msra.mxu0 %v440
    %442 = vmatprep.subr.mxu0 0.0
    %v443 = vand.u32 %v55, 4294901760
    %v444 = vsub.f32 %v55, %v443
    %v445 = vand.u32 %v444, 4294901760
    %v446 = vsub.f32 %v444, %v445
    %v447 = vand.u32 %v446, 4294901760
    %448 = vmatpush1.msra.mxu0 %v447
    %449 = vmatprep.subr.mxu0 0.0
    %v450 = vand.u32 %v56, 4294901760
    %v451 = vsub.f32 %v56, %v450
    %v452 = vand.u32 %v451, 4294901760
    %v453 = vsub.f32 %v451, %v452
    %v454 = vand.u32 %v453, 4294901760
    %455 = vmatpush1.msra.mxu0 %v454
    %456 = vmatprep.subr.mxu0 0.0
    %v457 = vand.u32 %v57, 4294901760
    %v458 = vsub.f32 %v57, %v457
    %v459 = vand.u32 %v458, 4294901760
    %v460 = vsub.f32 %v458, %v459
    %v461 = vand.u32 %v460, 4294901760
    %462 = vmatpush1.msra.mxu0 %v461
    %463 = vmatprep.subr.mxu0 0.0
    %v464 = vand.u32 %v58, 4294901760
    %v465 = vsub.f32 %v58, %v464
    %v466 = vand.u32 %v465, 4294901760
    %v467 = vsub.f32 %v465, %v466
    %v468 = vand.u32 %v467, 4294901760
    %469 = vmatpush1.msra.mxu0 %v468
    %v470 = vand.u32 %v124, 4294901760
    %471 = vmatprep.mubr.f32.mxu0 %v470
    %v472 = vand.u32 %v120, 4294901760
    %473 = vmatmul.mubr.f32.gmra.mrb[0].mxu0 %v472
    %v474 = vpop.f32.mrb[0].mxu0
    %v475 = vadd.f32 %v243, %v474
    %v476 = vpop.f32.mrb[0].mxu0
    %477 = vdwg.mxu0
    %478 = vmatprep.subr.mxu0 0.0
    %v479 = vand.u32 %v27, 4294901760
    %v480 = vsub.f32 %v27, %v479
    %481 = vmatpush1.msra.mxu0 %v480
    %482 = vmatprep.subr.mxu0 0.0
    %v483 = vand.u32 %v28, 4294901760
    %v484 = vsub.f32 %v28, %v483
    %485 = vmatpush1.msra.mxu0 %v484
    %486 = vmatprep.subr.mxu0 0.0
    %v487 = vand.u32 %v29, 4294901760
    %v488 = vsub.f32 %v29, %v487
    %489 = vmatpush1.msra.mxu0 %v488
    %490 = vmatprep.subr.mxu0 0.0
    %v491 = vand.u32 %v30, 4294901760
    %v492 = vsub.f32 %v30, %v491
    %493 = vmatpush1.msra.mxu0 %v492
    %494 = vmatprep.subr.mxu0 0.0
    %v495 = vand.u32 %v31, 4294901760
    %v496 = vsub.f32 %v31, %v495
    %497 = vmatpush1.msra.mxu0 %v496
    %498 = vmatprep.subr.mxu0 0.0
    %v499 = vand.u32 %v32, 4294901760
    %v500 = vsub.f32 %v32, %v499
    %501 = vmatpush1.msra.mxu0 %v500
    %502 = vmatprep.subr.mxu0 0.0
    %v503 = vand.u32 %v33, 4294901760
    %v504 = vsub.f32 %v33, %v503
    %505 = vmatpush1.msra.mxu0 %v504
    %506 = vmatprep.subr.mxu0 0.0
    %v507 = vand.u32 %v34, 4294901760
    %v508 = vsub.f32 %v34, %v507
    %509 = vmatpush1.msra.mxu0 %v508
    %510 = vmatprep.subr.mxu0 0.0
    %v511 = vand.u32 %v35, 4294901760
    %v512 = vsub.f32 %v35, %v511
    %513 = vmatpush1.msra.mxu0 %v512
    %514 = vmatprep.subr.mxu0 0.0
    %v515 = vand.u32 %v36, 4294901760
    %v516 = vsub.f32 %v36, %v515
    %517 = vmatpush1.msra.mxu0 %v516
    %518 = vmatprep.subr.mxu0 0.0
    %v519 = vand.u32 %v37, 4294901760
    %v520 = vsub.f32 %v37, %v519
    %521 = vmatpush1.msra.mxu0 %v520
    %522 = vmatprep.subr.mxu0 0.0
    %v523 = vand.u32 %v38, 4294901760
    %v524 = vsub.f32 %v38, %v523
    %525 = vmatpush1.msra.mxu0 %v524
    %526 = vmatprep.subr.mxu0 0.0
    %v527 = vand.u32 %v39, 4294901760
    %v528 = vsub.f32 %v39, %v527
    %529 = vmatpush1.msra.mxu0 %v528
    %530 = vmatprep.subr.mxu0 0.0
    %v531 = vand.u32 %v40, 4294901760
    %v532 = vsub.f32 %v40, %v531
    %533 = vmatpush1.msra.mxu0 %v532
    %534 = vmatprep.subr.mxu0 0.0
    %v535 = vand.u32 %v41, 4294901760
    %v536 = vsub.f32 %v41, %v535
    %537 = vmatpush1.msra.mxu0 %v536
    %538 = vmatprep.subr.mxu0 0.0
    %v539 = vand.u32 %v42, 4294901760
    %v540 = vsub.f32 %v42, %v539
    %541 = vmatpush1.msra.mxu0 %v540
    %542 = vmatprep.subr.mxu0 0.0
    %v543 = vand.u32 %v43, 4294901760
    %v544 = vsub.f32 %v43, %v543
    %545 = vmatpush1.msra.mxu0 %v544
    %546 = vmatprep.subr.mxu0 0.0
    %v547 = vand.u32 %v44, 4294901760
    %v548 = vsub.f32 %v44, %v547
    %549 = vmatpush1.msra.mxu0 %v548
    %550 = vmatprep.subr.mxu0 0.0
    %v551 = vand.u32 %v45, 4294901760
    %v552 = vsub.f32 %v45, %v551
    %553 = vmatpush1.msra.mxu0 %v552
    %554 = vmatprep.subr.mxu0 0.0
    %v555 = vand.u32 %v46, 4294901760
    %v556 = vsub.f32 %v46, %v555
    %557 = vmatpush1.msra.mxu0 %v556
    %558 = vmatprep.subr.mxu0 0.0
    %v559 = vand.u32 %v47, 4294901760
    %v560 = vsub.f32 %v47, %v559
    %561 = vmatpush1.msra.mxu0 %v560
    %562 = vmatprep.subr.mxu0 0.0
    %v563 = vand.u32 %v48, 4294901760
    %v564 = vsub.f32 %v48, %v563
    %565 = vmatpush1.msra.mxu0 %v564
    %566 = vmatprep.subr.mxu0 0.0
    %v567 = vand.u32 %v49, 4294901760
    %v568 = vsub.f32 %v49, %v567
    %569 = vmatpush1.msra.mxu0 %v568
    %570 = vmatprep.subr.mxu0 0.0
    %v571 = vand.u32 %v50, 4294901760
    %v572 = vsub.f32 %v50, %v571
    %573 = vmatpush1.msra.mxu0 %v572
    %574 = vmatprep.subr.mxu0 0.0
    %v575 = vand.u32 %v51, 4294901760
    %v576 = vsub.f32 %v51, %v575
    %577 = vmatpush1.msra.mxu0 %v576
    %578 = vmatprep.subr.mxu0 0.0
    %v579 = vand.u32 %v52, 4294901760
    %v580 = vsub.f32 %v52, %v579
    %581 = vmatpush1.msra.mxu0 %v580
    %582 = vmatprep.subr.mxu0 0.0
    %v583 = vand.u32 %v53, 4294901760
    %v584 = vsub.f32 %v53, %v583
    %585 = vmatpush1.msra.mxu0 %v584
    %586 = vmatprep.subr.mxu0 0.0
    %v587 = vand.u32 %v54, 4294901760
    %v588 = vsub.f32 %v54, %v587
    %589 = vmatpush1.msra.mxu0 %v588
    %590 = vmatprep.subr.mxu0 0.0
    %v591 = vand.u32 %v55, 4294901760
    %v592 = vsub.f32 %v55, %v591
    %593 = vmatpush1.msra.mxu0 %v592
    %594 = vmatprep.subr.mxu0 0.0
    %v595 = vand.u32 %v56, 4294901760
    %v596 = vsub.f32 %v56, %v595
    %597 = vmatpush1.msra.mxu0 %v596
    %598 = vmatprep.subr.mxu0 0.0
    %v599 = vand.u32 %v57, 4294901760
    %v600 = vsub.f32 %v57, %v599
    %601 = vmatpush1.msra.mxu0 %v600
    %602 = vmatprep.subr.mxu0 0.0
    %v603 = vand.u32 %v58, 4294901760
    %v604 = vsub.f32 %v58, %v603
    %605 = vmatpush1.msra.mxu0 %v604
    %v606 = vand.u32 %v124, 4294901760
    %v607 = vsub.f32 %v124, %v606
    %608 = vmatprep.mubr.f32.mxu0 %v607
    %v609 = vand.u32 %v120, 4294901760
    %v610 = vsub.f32 %v120, %v609
    %611 = vmatmul.mubr.f32.gmra.mrb[0].mxu0 %v610
    %v612 = vpop.f32.mrb[0].mxu0
    %v613 = vadd.f32 %v475, %v612
    %v614 = vpop.f32.mrb[0].mxu0
    %615 = vdwg.mxu0
    %616 = vmatprep.subr.mxu0 0.0
    %v617 = vand.u32 %v27, 4294901760
    %618 = vmatpush1.msra.mxu0 %v617
    %619 = vmatprep.subr.mxu0 0.0
    %v620 = vand.u32 %v28, 4294901760
    %621 = vmatpush1.msra.mxu0 %v620
    %622 = vmatprep.subr.mxu0 0.0
    %v623 = vand.u32 %v29, 4294901760
    %624 = vmatpush1.msra.mxu0 %v623
    %625 = vmatprep.subr.mxu0 0.0
    %v626 = vand.u32 %v30, 4294901760
    %627 = vmatpush1.msra.mxu0 %v626
    %628 = vmatprep.subr.mxu0 0.0
    %v629 = vand.u32 %v31, 4294901760
    %630 = vmatpush1.msra.mxu0 %v629
    %631 = vmatprep.subr.mxu0 0.0
    %v632 = vand.u32 %v32, 4294901760
    %633 = vmatpush1.msra.mxu0 %v632
    %634 = vmatprep.subr.mxu0 0.0
    %v635 = vand.u32 %v33, 4294901760
    %636 = vmatpush1.msra.mxu0 %v635
    %637 = vmatprep.subr.mxu0 0.0
    %v638 = vand.u32 %v34, 4294901760
    %639 = vmatpush1.msra.mxu0 %v638
    %640 = vmatprep.subr.mxu0 0.0
    %v641 = vand.u32 %v35, 4294901760
    %642 = vmatpush1.msra.mxu0 %v641
    %643 = vmatprep.subr.mxu0 0.0
    %v644 = vand.u32 %v36, 4294901760
    %645 = vmatpush1.msra.mxu0 %v644
    %646 = vmatprep.subr.mxu0 0.0
    %v647 = vand.u32 %v37, 4294901760
    %648 = vmatpush1.msra.mxu0 %v647
    %649 = vmatprep.subr.mxu0 0.0
    %v650 = vand.u32 %v38, 4294901760
    %651 = vmatpush1.msra.mxu0 %v650
    %652 = vmatprep.subr.mxu0 0.0
    %v653 = vand.u32 %v39, 4294901760
    %654 = vmatpush1.msra.mxu0 %v653
    %655 = vmatprep.subr.mxu0 0.0
    %v656 = vand.u32 %v40, 4294901760
    %657 = vmatpush1.msra.mxu0 %v656
    %658 = vmatprep.subr.mxu0 0.0
    %v659 = vand.u32 %v41, 4294901760
    %660 = vmatpush1.msra.mxu0 %v659
    %661 = vmatprep.subr.mxu0 0.0
    %v662 = vand.u32 %v42, 4294901760
    %663 = vmatpush1.msra.mxu0 %v662
    %664 = vmatprep.subr.mxu0 0.0
    %v665 = vand.u32 %v43, 4294901760
    %666 = vmatpush1.msra.mxu0 %v665
    %667 = vmatprep.subr.mxu0 0.0
    %v668 = vand.u32 %v44, 4294901760
    %669 = vmatpush1.msra.mxu0 %v668
    %670 = vmatprep.subr.mxu0 0.0
    %v671 = vand.u32 %v45, 4294901760
    %672 = vmatpush1.msra.mxu0 %v671
    %673 = vmatprep.subr.mxu0 0.0
    %v674 = vand.u32 %v46, 4294901760
    %675 = vmatpush1.msra.mxu0 %v674
    %676 = vmatprep.subr.mxu0 0.0
    %v677 = vand.u32 %v47, 4294901760
    %678 = vmatpush1.msra.mxu0 %v677
    %679 = vmatprep.subr.mxu0 0.0
    %v680 = vand.u32 %v48, 4294901760
    %681 = vmatpush1.msra.mxu0 %v680
    %682 = vmatprep.subr.mxu0 0.0
    %v683 = vand.u32 %v49, 4294901760
    %684 = vmatpush1.msra.mxu0 %v683
    %685 = vmatprep.subr.mxu0 0.0
    %v686 = vand.u32 %v50, 4294901760
    %687 = vmatpush1.msra.mxu0 %v686
    %688 = vmatprep.subr.mxu0 0.0
    %v689 = vand.u32 %v51, 4294901760
    %690 = vmatpush1.msra.mxu0 %v689
    %691 = vmatprep.subr.mxu0 0.0
    %v692 = vand.u32 %v52, 4294901760
    %693 = vmatpush1.msra.mxu0 %v692
    %694 = vmatprep.subr.mxu0 0.0
    %v695 = vand.u32 %v53, 4294901760
    %696 = vmatpush1.msra.mxu0 %v695
    %697 = vmatprep.subr.mxu0 0.0
    %v698 = vand.u32 %v54, 4294901760
    %699 = vmatpush1.msra.mxu0 %v698
    %700 = vmatprep.subr.mxu0 0.0
    %v701 = vand.u32 %v55, 4294901760
    %702 = vmatpush1.msra.mxu0 %v701
    %703 = vmatprep.subr.mxu0 0.0
    %v704 = vand.u32 %v56, 4294901760
    %705 = vmatpush1.msra.mxu0 %v704
    %706 = vmatprep.subr.mxu0 0.0
    %v707 = vand.u32 %v57, 4294901760
    %708 = vmatpush1.msra.mxu0 %v707
    %709 = vmatprep.subr.mxu0 0.0
    %v710 = vand.u32 %v58, 4294901760
    %711 = vmatpush1.msra.mxu0 %v710
    %v712 = vand.u32 %v124, 4294901760
    %v713 = vsub.f32 %v124, %v712
    %v714 = vand.u32 %v713, 4294901760
    %715 = vmatprep.mubr.f32.mxu0 %v714
    %v716 = vand.u32 %v120, 4294901760
    %v717 = vsub.f32 %v120, %v716
    %v718 = vand.u32 %v717, 4294901760
    %719 = vmatmul.mubr.f32.gmra.mrb[0].mxu0 %v718
    %v720 = vpop.f32.mrb[0].mxu0
    %v721 = vadd.f32 %v613, %v720
    %v722 = vpop.f32.mrb[0].mxu0
    %723 = vdwg.mxu0
    %724 = vmatprep.subr.mxu0 0.0
    %v725 = vand.u32 %v27, 4294901760
    %v726 = vsub.f32 %v27, %v725
    %v727 = vand.u32 %v726, 4294901760
    %728 = vmatpush1.msra.mxu0 %v727
    %729 = vmatprep.subr.mxu0 0.0
    %v730 = vand.u32 %v28, 4294901760
    %v731 = vsub.f32 %v28, %v730
    %v732 = vand.u32 %v731, 4294901760
    %733 = vmatpush1.msra.mxu0 %v732
    %734 = vmatprep.subr.mxu0 0.0
    %v735 = vand.u32 %v29, 4294901760
    %v736 = vsub.f32 %v29, %v735
    %v737 = vand.u32 %v736, 4294901760
    %738 = vmatpush1.msra.mxu0 %v737
    %739 = vmatprep.subr.mxu0 0.0
    %v740 = vand.u32 %v30, 4294901760
    %v741 = vsub.f32 %v30, %v740
    %v742 = vand.u32 %v741, 4294901760
    %743 = vmatpush1.msra.mxu0 %v742
    %744 = vmatprep.subr.mxu0 0.0
    %v745 = vand.u32 %v31, 4294901760
    %v746 = vsub.f32 %v31, %v745
    %v747 = vand.u32 %v746, 4294901760
    %748 = vmatpush1.msra.mxu0 %v747
    %749 = vmatprep.subr.mxu0 0.0
    %v750 = vand.u32 %v32, 4294901760
    %v751 = vsub.f32 %v32, %v750
    %v752 = vand.u32 %v751, 4294901760
    %753 = vmatpush1.msra.mxu0 %v752
    %754 = vmatprep.subr.mxu0 0.0
    %v755 = vand.u32 %v33, 4294901760
    %v756 = vsub.f32 %v33, %v755
    %v757 = vand.u32 %v756, 4294901760
    %758 = vmatpush1.msra.mxu0 %v757
    %759 = vmatprep.subr.mxu0 0.0
    %v760 = vand.u32 %v34, 4294901760
    %v761 = vsub.f32 %v34, %v760
    %v762 = vand.u32 %v761, 4294901760
    %763 = vmatpush1.msra.mxu0 %v762
    %764 = vmatprep.subr.mxu0 0.0
    %v765 = vand.u32 %v35, 4294901760
    %v766 = vsub.f32 %v35, %v765
    %v767 = vand.u32 %v766, 4294901760
    %768 = vmatpush1.msra.mxu0 %v767
    %769 = vmatprep.subr.mxu0 0.0
    %v770 = vand.u32 %v36, 4294901760
    %v771 = vsub.f32 %v36, %v770
    %v772 = vand.u32 %v771, 4294901760
    %773 = vmatpush1.msra.mxu0 %v772
    %774 = vmatprep.subr.mxu0 0.0
    %v775 = vand.u32 %v37, 4294901760
    %v776 = vsub.f32 %v37, %v775
    %v777 = vand.u32 %v776, 4294901760
    %778 = vmatpush1.msra.mxu0 %v777
    %779 = vmatprep.subr.mxu0 0.0
    %v780 = vand.u32 %v38, 4294901760
    %v781 = vsub.f32 %v38, %v780
    %v782 = vand.u32 %v781, 4294901760
    %783 = vmatpush1.msra.mxu0 %v782
    %784 = vmatprep.subr.mxu0 0.0
    %v785 = vand.u32 %v39, 4294901760
    %v786 = vsub.f32 %v39, %v785
    %v787 = vand.u32 %v786, 4294901760
    %788 = vmatpush1.msra.mxu0 %v787
    %789 = vmatprep.subr.mxu0 0.0
    %v790 = vand.u32 %v40, 4294901760
    %v791 = vsub.f32 %v40, %v790
    %v792 = vand.u32 %v791, 4294901760
    %793 = vmatpush1.msra.mxu0 %v792
    %794 = vmatprep.subr.mxu0 0.0
    %v795 = vand.u32 %v41, 4294901760
    %v796 = vsub.f32 %v41, %v795
    %v797 = vand.u32 %v796, 4294901760
    %798 = vmatpush1.msra.mxu0 %v797
    %799 = vmatprep.subr.mxu0 0.0
    %v800 = vand.u32 %v42, 4294901760
    %v801 = vsub.f32 %v42, %v800
    %v802 = vand.u32 %v801, 4294901760
    %803 = vmatpush1.msra.mxu0 %v802
    %804 = vmatprep.subr.mxu0 0.0
    %v805 = vand.u32 %v43, 4294901760
    %v806 = vsub.f32 %v43, %v805
    %v807 = vand.u32 %v806, 4294901760
    %808 = vmatpush1.msra.mxu0 %v807
    %809 = vmatprep.subr.mxu0 0.0
    %v810 = vand.u32 %v44, 4294901760
    %v811 = vsub.f32 %v44, %v810
    %v812 = vand.u32 %v811, 4294901760
    %813 = vmatpush1.msra.mxu0 %v812
    %814 = vmatprep.subr.mxu0 0.0
    %v815 = vand.u32 %v45, 4294901760
    %v816 = vsub.f32 %v45, %v815
    %v817 = vand.u32 %v816, 4294901760
    %818 = vmatpush1.msra.mxu0 %v817
    %819 = vmatprep.subr.mxu0 0.0
    %v820 = vand.u32 %v46, 4294901760
    %v821 = vsub.f32 %v46, %v820
    %v822 = vand.u32 %v821, 4294901760
    %823 = vmatpush1.msra.mxu0 %v822
    %824 = vmatprep.subr.mxu0 0.0
    %v825 = vand.u32 %v47, 4294901760
    %v826 = vsub.f32 %v47, %v825
    %v827 = vand.u32 %v826, 4294901760
    %828 = vmatpush1.msra.mxu0 %v827
    %829 = vmatprep.subr.mxu0 0.0
    %v830 = vand.u32 %v48, 4294901760
    %v831 = vsub.f32 %v48, %v830
    %v832 = vand.u32 %v831, 4294901760
    %833 = vmatpush1.msra.mxu0 %v832
    %834 = vmatprep.subr.mxu0 0.0
    %v835 = vand.u32 %v49, 4294901760
    %v836 = vsub.f32 %v49, %v835
    %v837 = vand.u32 %v836, 4294901760
    %838 = vmatpush1.msra.mxu0 %v837
    %839 = vmatprep.subr.mxu0 0.0
    %v840 = vand.u32 %v50, 4294901760
    %v841 = vsub.f32 %v50, %v840
    %v842 = vand.u32 %v841, 4294901760
    %843 = vmatpush1.msra.mxu0 %v842
    %844 = vmatprep.subr.mxu0 0.0
    %v845 = vand.u32 %v51, 4294901760
    %v846 = vsub.f32 %v51, %v845
    %v847 = vand.u32 %v846, 4294901760
    %848 = vmatpush1.msra.mxu0 %v847
    %849 = vmatprep.subr.mxu0 0.0
    %v850 = vand.u32 %v52, 4294901760
    %v851 = vsub.f32 %v52, %v850
    %v852 = vand.u32 %v851, 4294901760
    %853 = vmatpush1.msra.mxu0 %v852
    %854 = vmatprep.subr.mxu0 0.0
    %v855 = vand.u32 %v53, 4294901760
    %v856 = vsub.f32 %v53, %v855
    %v857 = vand.u32 %v856, 4294901760
    %858 = vmatpush1.msra.mxu0 %v857
    %859 = vmatprep.subr.mxu0 0.0
    %v860 = vand.u32 %v54, 4294901760
    %v861 = vsub.f32 %v54, %v860
    %v862 = vand.u32 %v861, 4294901760
    %863 = vmatpush1.msra.mxu0 %v862
    %864 = vmatprep.subr.mxu0 0.0
    %v865 = vand.u32 %v55, 4294901760
    %v866 = vsub.f32 %v55, %v865
    %v867 = vand.u32 %v866, 4294901760
    %868 = vmatpush1.msra.mxu0 %v867
    %869 = vmatprep.subr.mxu0 0.0
    %v870 = vand.u32 %v56, 4294901760
    %v871 = vsub.f32 %v56, %v870
    %v872 = vand.u32 %v871, 4294901760
    %873 = vmatpush1.msra.mxu0 %v872
    %874 = vmatprep.subr.mxu0 0.0
    %v875 = vand.u32 %v57, 4294901760
    %v876 = vsub.f32 %v57, %v875
    %v877 = vand.u32 %v876, 4294901760
    %878 = vmatpush1.msra.mxu0 %v877
    %879 = vmatprep.subr.mxu0 0.0
    %v880 = vand.u32 %v58, 4294901760
    %v881 = vsub.f32 %v58, %v880
    %v882 = vand.u32 %v881, 4294901760
    %883 = vmatpush1.msra.mxu0 %v882
    %v884 = vand.u32 %v124, 4294901760
    %885 = vmatprep.mubr.f32.mxu0 %v884
    %v886 = vand.u32 %v120, 4294901760
    %887 = vmatmul.mubr.f32.gmra.mrb[0].mxu0 %v886
    %v888 = vpop.f32.mrb[0].mxu0
    %v889 = vadd.f32 %v721, %v888
    %v890 = vpop.f32.mrb[0].mxu0
    %891 = vdwg.mxu0
    %892 = vmatprep.subr.mxu0 0.0
    %v893 = vand.u32 %v27, 4294901760
    %894 = vmatpush1.msra.mxu0 %v893
    %895 = vmatprep.subr.mxu0 0.0
    %v896 = vand.u32 %v28, 4294901760
    %897 = vmatpush1.msra.mxu0 %v896
    %898 = vmatprep.subr.mxu0 0.0
    %v899 = vand.u32 %v29, 4294901760
    %900 = vmatpush1.msra.mxu0 %v899
    %901 = vmatprep.subr.mxu0 0.0
    %v902 = vand.u32 %v30, 4294901760
    %903 = vmatpush1.msra.mxu0 %v902
    %904 = vmatprep.subr.mxu0 0.0
    %v905 = vand.u32 %v31, 4294901760
    %906 = vmatpush1.msra.mxu0 %v905
    %907 = vmatprep.subr.mxu0 0.0
    %v908 = vand.u32 %v32, 4294901760
    %909 = vmatpush1.msra.mxu0 %v908
    %910 = vmatprep.subr.mxu0 0.0
    %v911 = vand.u32 %v33, 4294901760
    %912 = vmatpush1.msra.mxu0 %v911
    %913 = vmatprep.subr.mxu0 0.0
    %v914 = vand.u32 %v34, 4294901760
    %915 = vmatpush1.msra.mxu0 %v914
    %916 = vmatprep.subr.mxu0 0.0
    %v917 = vand.u32 %v35, 4294901760
    %918 = vmatpush1.msra.mxu0 %v917
    %919 = vmatprep.subr.mxu0 0.0
    %v920 = vand.u32 %v36, 4294901760
    %921 = vmatpush1.msra.mxu0 %v920
    %922 = vmatprep.subr.mxu0 0.0
    %v923 = vand.u32 %v37, 4294901760
    %924 = vmatpush1.msra.mxu0 %v923
    %925 = vmatprep.subr.mxu0 0.0
    %v926 = vand.u32 %v38, 4294901760
    %927 = vmatpush1.msra.mxu0 %v926
    %928 = vmatprep.subr.mxu0 0.0
    %v929 = vand.u32 %v39, 4294901760
    %930 = vmatpush1.msra.mxu0 %v929
    %931 = vmatprep.subr.mxu0 0.0
    %v932 = vand.u32 %v40, 4294901760
    %933 = vmatpush1.msra.mxu0 %v932
    %934 = vmatprep.subr.mxu0 0.0
    %v935 = vand.u32 %v41, 4294901760
    %936 = vmatpush1.msra.mxu0 %v935
    %937 = vmatprep.subr.mxu0 0.0
    %v938 = vand.u32 %v42, 4294901760
    %939 = vmatpush1.msra.mxu0 %v938
    %940 = vmatprep.subr.mxu0 0.0
    %v941 = vand.u32 %v43, 4294901760
    %942 = vmatpush1.msra.mxu0 %v941
    %943 = vmatprep.subr.mxu0 0.0
    %v944 = vand.u32 %v44, 4294901760
    %945 = vmatpush1.msra.mxu0 %v944
    %946 = vmatprep.subr.mxu0 0.0
    %v947 = vand.u32 %v45, 4294901760
    %948 = vmatpush1.msra.mxu0 %v947
    %949 = vmatprep.subr.mxu0 0.0
    %v950 = vand.u32 %v46, 4294901760
    %951 = vmatpush1.msra.mxu0 %v950
    %952 = vmatprep.subr.mxu0 0.0
    %v953 = vand.u32 %v47, 4294901760
    %954 = vmatpush1.msra.mxu0 %v953
    %955 = vmatprep.subr.mxu0 0.0
    %v956 = vand.u32 %v48, 4294901760
    %957 = vmatpush1.msra.mxu0 %v956
    %958 = vmatprep.subr.mxu0 0.0
    %v959 = vand.u32 %v49, 4294901760
    %960 = vmatpush1.msra.mxu0 %v959
    %961 = vmatprep.subr.mxu0 0.0
    %v962 = vand.u32 %v50, 4294901760
    %963 = vmatpush1.msra.mxu0 %v962
    %964 = vmatprep.subr.mxu0 0.0
    %v965 = vand.u32 %v51, 4294901760
    %966 = vmatpush1.msra.mxu0 %v965
    %967 = vmatprep.subr.mxu0 0.0
    %v968 = vand.u32 %v52, 4294901760
    %969 = vmatpush1.msra.mxu0 %v968
    %970 = vmatprep.subr.mxu0 0.0
    %v971 = vand.u32 %v53, 4294901760
    %972 = vmatpush1.msra.mxu0 %v971
    %973 = vmatprep.subr.mxu0 0.0
    %v974 = vand.u32 %v54, 4294901760
    %975 = vmatpush1.msra.mxu0 %v974
    %976 = vmatprep.subr.mxu0 0.0
    %v977 = vand.u32 %v55, 4294901760
    %978 = vmatpush1.msra.mxu0 %v977
    %979 = vmatprep.subr.mxu0 0.0
    %v980 = vand.u32 %v56, 4294901760
    %981 = vmatpush1.msra.mxu0 %v980
    %982 = vmatprep.subr.mxu0 0.0
    %v983 = vand.u32 %v57, 4294901760
    %984 = vmatpush1.msra.mxu0 %v983
    %985 = vmatprep.subr.mxu0 0.0
    %v986 = vand.u32 %v58, 4294901760
    %987 = vmatpush1.msra.mxu0 %v986
    %v988 = vand.u32 %v124, 4294901760
    %989 = vmatprep.mubr.f32.mxu0 %v988
    %v990 = vand.u32 %v120, 4294901760
    %991 = vmatmul.mubr.f32.gmra.mrb[0].mxu0 %v990
    %v992 = vpop.f32.mrb[0].mxu0
    %v993 = vadd.f32 %v889, %v992
    %v994 = vpop.f32.mrb[0].mxu0
    %995 = vdwg.mxu0
    %996 = vmatprep.subr.mxu0 0.0
    %v997 = vand.u32 %v59, 4294901760
    %998 = vmatpush1.msra.mxu0 %v997
    %999 = vmatprep.subr.mxu0 0.0
    %v1000 = vand.u32 %v60, 4294901760
    %1001 = vmatpush1.msra.mxu0 %v1000
    %1002 = vmatprep.subr.mxu0 0.0
    %v1003 = vand.u32 %v61, 4294901760
    %1004 = vmatpush1.msra.mxu0 %v1003
    %1005 = vmatprep.subr.mxu0 0.0
    %v1006 = vand.u32 %v62, 4294901760
    %1007 = vmatpush1.msra.mxu0 %v1006
    %1008 = vmatprep.subr.mxu0 0.0
    %v1009 = vand.u32 %v63, 4294901760
    %1010 = vmatpush1.msra.mxu0 %v1009
    %1011 = vmatprep.subr.mxu0 0.0
    %v1012 = vand.u32 %v64, 4294901760
    %1013 = vmatpush1.msra.mxu0 %v1012
    %1014 = vmatprep.subr.mxu0 0.0
    %v1015 = vand.u32 %v65, 4294901760
    %1016 = vmatpush1.msra.mxu0 %v1015
    %1017 = vmatprep.subr.mxu0 0.0
    %v1018 = vand.u32 %v66, 4294901760
    %1019 = vmatpush1.msra.mxu0 %v1018
    %1020 = vmatprep.subr.mxu0 0.0
    %v1021 = vand.u32 %v67, 4294901760
    %1022 = vmatpush1.msra.mxu0 %v1021
    %1023 = vmatprep.subr.mxu0 0.0
    %v1024 = vand.u32 %v68, 4294901760
    %1025 = vmatpush1.msra.mxu0 %v1024
    %1026 = vmatprep.subr.mxu0 0.0
    %v1027 = vand.u32 %v69, 4294901760
    %1028 = vmatpush1.msra.mxu0 %v1027
    %1029 = vmatprep.subr.mxu0 0.0
    %v1030 = vand.u32 %v70, 4294901760
    %1031 = vmatpush1.msra.mxu0 %v1030
    %1032 = vmatprep.subr.mxu0 0.0
    %v1033 = vand.u32 %v71, 4294901760
    %1034 = vmatpush1.msra.mxu0 %v1033
    %1035 = vmatprep.subr.mxu0 0.0
    %v1036 = vand.u32 %v72, 4294901760
    %1037 = vmatpush1.msra.mxu0 %v1036
    %1038 = vmatprep.subr.mxu0 0.0
    %v1039 = vand.u32 %v73, 4294901760
    %1040 = vmatpush1.msra.mxu0 %v1039
    %1041 = vmatprep.subr.mxu0 0.0
    %v1042 = vand.u32 %v74, 4294901760
    %1043 = vmatpush1.msra.mxu0 %v1042
    %1044 = vmatprep.subr.mxu0 0.0
    %v1045 = vand.u32 %v75, 4294901760
    %1046 = vmatpush1.msra.mxu0 %v1045
    %1047 = vmatprep.subr.mxu0 0.0
    %v1048 = vand.u32 %v76, 4294901760
    %1049 = vmatpush1.msra.mxu0 %v1048
    %1050 = vmatprep.subr.mxu0 0.0
    %v1051 = vand.u32 %v77, 4294901760
    %1052 = vmatpush1.msra.mxu0 %v1051
    %1053 = vmatprep.subr.mxu0 0.0
    %v1054 = vand.u32 %v78, 4294901760
    %1055 = vmatpush1.msra.mxu0 %v1054
    %1056 = vmatprep.subr.mxu0 0.0
    %v1057 = vand.u32 %v79, 4294901760
    %1058 = vmatpush1.msra.mxu0 %v1057
    %1059 = vmatprep.subr.mxu0 0.0
    %v1060 = vand.u32 %v80, 4294901760
    %1061 = vmatpush1.msra.mxu0 %v1060
    %1062 = vmatprep.subr.mxu0 0.0
    %v1063 = vand.u32 %v81, 4294901760
    %1064 = vmatpush1.msra.mxu0 %v1063
    %1065 = vmatprep.subr.mxu0 0.0
    %v1066 = vand.u32 %v82, 4294901760
    %1067 = vmatpush1.msra.mxu0 %v1066
    %1068 = vmatprep.subr.mxu0 0.0
    %v1069 = vand.u32 %v83, 4294901760
    %1070 = vmatpush1.msra.mxu0 %v1069
    %1071 = vmatprep.subr.mxu0 0.0
    %v1072 = vand.u32 %v84, 4294901760
    %1073 = vmatpush1.msra.mxu0 %v1072
    %1074 = vmatprep.subr.mxu0 0.0
    %v1075 = vand.u32 %v85, 4294901760
    %1076 = vmatpush1.msra.mxu0 %v1075
    %1077 = vmatprep.subr.mxu0 0.0
    %v1078 = vand.u32 %v86, 4294901760
    %1079 = vmatpush1.msra.mxu0 %v1078
    %1080 = vmatprep.subr.mxu0 0.0
    %v1081 = vand.u32 %v87, 4294901760
    %1082 = vmatpush1.msra.mxu0 %v1081
    %1083 = vmatprep.subr.mxu0 0.0
    %v1084 = vand.u32 %v132, 4294901760
    %1085 = vmatpush1.msra.mxu0 %v1084
    %1086 = vmatprep.subr.mxu0 0.0
    %1087 = vmatpush1.msra.mxu0 0.0
    %1088 = vmatprep.subr.mxu0 0.0
    %1089 = vmatpush1.msra.mxu0 0.0
    %v1090 = vand.u32 %v128, 4294901760
    %v1091 = vsub.f32 %v128, %v1090
    %v1092 = vand.u32 %v1091, 4294901760
    %v1093 = vsub.f32 %v1091, %v1092
    %v1094 = vand.u32 %v1093, 4294901760
    %1095 = vmatprep.mubr.f32.mxu0 %v1094
    %v1096 = vand.u32 %v121, 4294901760
    %v1097 = vsub.f32 %v121, %v1096
    %v1098 = vand.u32 %v1097, 4294901760
    %v1099 = vsub.f32 %v1097, %v1098
    %v1100 = vand.u32 %v1099, 4294901760
    %1101 = vmatmul.mubr.f32.gmra.mrb[0].mxu0 %v1100
    %v1102 = vpop.f32.mrb[0].mxu0
    %v1103 = vadd.f32 %v993, %v1102
    %v1104 = vpop.f32.mrb[0].mxu0
    %1105 = vdwg.mxu0
    %1106 = vmatprep.subr.mxu0 0.0
    %v1107 = vand.u32 %v59, 4294901760
    %v1108 = vsub.f32 %v59, %v1107
    %v1109 = vand.u32 %v1108, 4294901760
    %v1110 = vsub.f32 %v1108, %v1109
    %v1111 = vand.u32 %v1110, 4294901760
    %1112 = vmatpush1.msra.mxu0 %v1111
    %1113 = vmatprep.subr.mxu0 0.0
    %v1114 = vand.u32 %v60, 4294901760
    %v1115 = vsub.f32 %v60, %v1114
    %v1116 = vand.u32 %v1115, 4294901760
    %v1117 = vsub.f32 %v1115, %v1116
    %v1118 = vand.u32 %v1117, 4294901760
    %1119 = vmatpush1.msra.mxu0 %v1118
    %1120 = vmatprep.subr.mxu0 0.0
    %v1121 = vand.u32 %v61, 4294901760
    %v1122 = vsub.f32 %v61, %v1121
    %v1123 = vand.u32 %v1122, 4294901760
    %v1124 = vsub.f32 %v1122, %v1123
    %v1125 = vand.u32 %v1124, 4294901760
    %1126 = vmatpush1.msra.mxu0 %v1125
    %1127 = vmatprep.subr.mxu0 0.0
    %v1128 = vand.u32 %v62, 4294901760
    %v1129 = vsub.f32 %v62, %v1128
    %v1130 = vand.u32 %v1129, 4294901760
    %v1131 = vsub.f32 %v1129, %v1130
    %v1132 = vand.u32 %v1131, 4294901760
    %1133 = vmatpush1.msra.mxu0 %v1132
    %1134 = vmatprep.subr.mxu0 0.0
    %v1135 = vand.u32 %v63, 4294901760
    %v1136 = vsub.f32 %v63, %v1135
    %v1137 = vand.u32 %v1136, 4294901760
    %v1138 = vsub.f32 %v1136, %v1137
    %v1139 = vand.u32 %v1138, 4294901760
    %1140 = vmatpush1.msra.mxu0 %v1139
    %1141 = vmatprep.subr.mxu0 0.0
    %v1142 = vand.u32 %v64, 4294901760
    %v1143 = vsub.f32 %v64, %v1142
    %v1144 = vand.u32 %v1143, 4294901760
    %v1145 = vsub.f32 %v1143, %v1144
    %v1146 = vand.u32 %v1145, 4294901760
    %1147 = vmatpush1.msra.mxu0 %v1146
    %1148 = vmatprep.subr.mxu0 0.0
    %v1149 = vand.u32 %v65, 4294901760
    %v1150 = vsub.f32 %v65, %v1149
    %v1151 = vand.u32 %v1150, 4294901760
    %v1152 = vsub.f32 %v1150, %v1151
    %v1153 = vand.u32 %v1152, 4294901760
    %1154 = vmatpush1.msra.mxu0 %v1153
    %1155 = vmatprep.subr.mxu0 0.0
    %v1156 = vand.u32 %v66, 4294901760
    %v1157 = vsub.f32 %v66, %v1156
    %v1158 = vand.u32 %v1157, 4294901760
    %v1159 = vsub.f32 %v1157, %v1158
    %v1160 = vand.u32 %v1159, 4294901760
    %1161 = vmatpush1.msra.mxu0 %v1160
    %1162 = vmatprep.subr.mxu0 0.0
    %v1163 = vand.u32 %v67, 4294901760
    %v1164 = vsub.f32 %v67, %v1163
    %v1165 = vand.u32 %v1164, 4294901760
    %v1166 = vsub.f32 %v1164, %v1165
    %v1167 = vand.u32 %v1166, 4294901760
    %1168 = vmatpush1.msra.mxu0 %v1167
    %1169 = vmatprep.subr.mxu0 0.0
    %v1170 = vand.u32 %v68, 4294901760
    %v1171 = vsub.f32 %v68, %v1170
    %v1172 = vand.u32 %v1171, 4294901760
    %v1173 = vsub.f32 %v1171, %v1172
    %v1174 = vand.u32 %v1173, 4294901760
    %1175 = vmatpush1.msra.mxu0 %v1174
    %1176 = vmatprep.subr.mxu0 0.0
    %v1177 = vand.u32 %v69, 4294901760
    %v1178 = vsub.f32 %v69, %v1177
    %v1179 = vand.u32 %v1178, 4294901760
    %v1180 = vsub.f32 %v1178, %v1179
    %v1181 = vand.u32 %v1180, 4294901760
    %1182 = vmatpush1.msra.mxu0 %v1181
    %1183 = vmatprep.subr.mxu0 0.0
    %v1184 = vand.u32 %v70, 4294901760
    %v1185 = vsub.f32 %v70, %v1184
    %v1186 = vand.u32 %v1185, 4294901760
    %v1187 = vsub.f32 %v1185, %v1186
    %v1188 = vand.u32 %v1187, 4294901760
    %1189 = vmatpush1.msra.mxu0 %v1188
    %1190 = vmatprep.subr.mxu0 0.0
    %v1191 = vand.u32 %v71, 4294901760
    %v1192 = vsub.f32 %v71, %v1191
    %v1193 = vand.u32 %v1192, 4294901760
    %v1194 = vsub.f32 %v1192, %v1193
    %v1195 = vand.u32 %v1194, 4294901760
    %1196 = vmatpush1.msra.mxu0 %v1195
    %1197 = vmatprep.subr.mxu0 0.0
    %v1198 = vand.u32 %v72, 4294901760
    %v1199 = vsub.f32 %v72, %v1198
    %v1200 = vand.u32 %v1199, 4294901760
    %v1201 = vsub.f32 %v1199, %v1200
    %v1202 = vand.u32 %v1201, 4294901760
    %1203 = vmatpush1.msra.mxu0 %v1202
    %1204 = vmatprep.subr.mxu0 0.0
    %v1205 = vand.u32 %v73, 4294901760
    %v1206 = vsub.f32 %v73, %v1205
    %v1207 = vand.u32 %v1206, 4294901760
    %v1208 = vsub.f32 %v1206, %v1207
    %v1209 = vand.u32 %v1208, 4294901760
    %1210 = vmatpush1.msra.mxu0 %v1209
    %1211 = vmatprep.subr.mxu0 0.0
    %v1212 = vand.u32 %v74, 4294901760
    %v1213 = vsub.f32 %v74, %v1212
    %v1214 = vand.u32 %v1213, 4294901760
    %v1215 = vsub.f32 %v1213, %v1214
    %v1216 = vand.u32 %v1215, 4294901760
    %1217 = vmatpush1.msra.mxu0 %v1216
    %1218 = vmatprep.subr.mxu0 0.0
    %v1219 = vand.u32 %v75, 4294901760
    %v1220 = vsub.f32 %v75, %v1219
    %v1221 = vand.u32 %v1220, 4294901760
    %v1222 = vsub.f32 %v1220, %v1221
    %v1223 = vand.u32 %v1222, 4294901760
    %1224 = vmatpush1.msra.mxu0 %v1223
    %1225 = vmatprep.subr.mxu0 0.0
    %v1226 = vand.u32 %v76, 4294901760
    %v1227 = vsub.f32 %v76, %v1226
    %v1228 = vand.u32 %v1227, 4294901760
    %v1229 = vsub.f32 %v1227, %v1228
    %v1230 = vand.u32 %v1229, 4294901760
    %1231 = vmatpush1.msra.mxu0 %v1230
    %1232 = vmatprep.subr.mxu0 0.0
    %v1233 = vand.u32 %v77, 4294901760
    %v1234 = vsub.f32 %v77, %v1233
    %v1235 = vand.u32 %v1234, 4294901760
    %v1236 = vsub.f32 %v1234, %v1235
    %v1237 = vand.u32 %v1236, 4294901760
    %1238 = vmatpush1.msra.mxu0 %v1237
    %1239 = vmatprep.subr.mxu0 0.0
    %v1240 = vand.u32 %v78, 4294901760
    %v1241 = vsub.f32 %v78, %v1240
    %v1242 = vand.u32 %v1241, 4294901760
    %v1243 = vsub.f32 %v1241, %v1242
    %v1244 = vand.u32 %v1243, 4294901760
    %1245 = vmatpush1.msra.mxu0 %v1244
    %1246 = vmatprep.subr.mxu0 0.0
    %v1247 = vand.u32 %v79, 4294901760
    %v1248 = vsub.f32 %v79, %v1247
    %v1249 = vand.u32 %v1248, 4294901760
    %v1250 = vsub.f32 %v1248, %v1249
    %v1251 = vand.u32 %v1250, 4294901760
    %1252 = vmatpush1.msra.mxu0 %v1251
    %1253 = vmatprep.subr.mxu0 0.0
    %v1254 = vand.u32 %v80, 4294901760
    %v1255 = vsub.f32 %v80, %v1254
    %v1256 = vand.u32 %v1255, 4294901760
    %v1257 = vsub.f32 %v1255, %v1256
    %v1258 = vand.u32 %v1257, 4294901760
    %1259 = vmatpush1.msra.mxu0 %v1258
    %1260 = vmatprep.subr.mxu0 0.0
    %v1261 = vand.u32 %v81, 4294901760
    %v1262 = vsub.f32 %v81, %v1261
    %v1263 = vand.u32 %v1262, 4294901760
    %v1264 = vsub.f32 %v1262, %v1263
    %v1265 = vand.u32 %v1264, 4294901760
    %1266 = vmatpush1.msra.mxu0 %v1265
    %1267 = vmatprep.subr.mxu0 0.0
    %v1268 = vand.u32 %v82, 4294901760
    %v1269 = vsub.f32 %v82, %v1268
    %v1270 = vand.u32 %v1269, 4294901760
    %v1271 = vsub.f32 %v1269, %v1270
    %v1272 = vand.u32 %v1271, 4294901760
    %1273 = vmatpush1.msra.mxu0 %v1272
    %1274 = vmatprep.subr.mxu0 0.0
    %v1275 = vand.u32 %v83, 4294901760
    %v1276 = vsub.f32 %v83, %v1275
    %v1277 = vand.u32 %v1276, 4294901760
    %v1278 = vsub.f32 %v1276, %v1277
    %v1279 = vand.u32 %v1278, 4294901760
    %1280 = vmatpush1.msra.mxu0 %v1279
    %1281 = vmatprep.subr.mxu0 0.0
    %v1282 = vand.u32 %v84, 4294901760
    %v1283 = vsub.f32 %v84, %v1282
    %v1284 = vand.u32 %v1283, 4294901760
    %v1285 = vsub.f32 %v1283, %v1284
    %v1286 = vand.u32 %v1285, 4294901760
    %1287 = vmatpush1.msra.mxu0 %v1286
    %1288 = vmatprep.subr.mxu0 0.0
    %v1289 = vand.u32 %v85, 4294901760
    %v1290 = vsub.f32 %v85, %v1289
    %v1291 = vand.u32 %v1290, 4294901760
    %v1292 = vsub.f32 %v1290, %v1291
    %v1293 = vand.u32 %v1292, 4294901760
    %1294 = vmatpush1.msra.mxu0 %v1293
    %1295 = vmatprep.subr.mxu0 0.0
    %v1296 = vand.u32 %v86, 4294901760
    %v1297 = vsub.f32 %v86, %v1296
    %v1298 = vand.u32 %v1297, 4294901760
    %v1299 = vsub.f32 %v1297, %v1298
    %v1300 = vand.u32 %v1299, 4294901760
    %1301 = vmatpush1.msra.mxu0 %v1300
    %1302 = vmatprep.subr.mxu0 0.0
    %v1303 = vand.u32 %v87, 4294901760
    %v1304 = vsub.f32 %v87, %v1303
    %v1305 = vand.u32 %v1304, 4294901760
    %v1306 = vsub.f32 %v1304, %v1305
    %v1307 = vand.u32 %v1306, 4294901760
    %1308 = vmatpush1.msra.mxu0 %v1307
    %1309 = vmatprep.subr.mxu0 0.0
    %v1310 = vand.u32 %v132, 4294901760
    %v1311 = vsub.f32 %v132, %v1310
    %v1312 = vand.u32 %v1311, 4294901760
    %v1313 = vsub.f32 %v1311, %v1312
    %v1314 = vand.u32 %v1313, 4294901760
    %1315 = vmatpush1.msra.mxu0 %v1314
    %1316 = vmatprep.subr.mxu0 0.0
    %1317 = vmatpush1.msra.mxu0 0.0
    %1318 = vmatprep.subr.mxu0 0.0
    %1319 = vmatpush1.msra.mxu0 0.0
    %v1320 = vand.u32 %v128, 4294901760
    %1321 = vmatprep.mubr.f32.mxu0 %v1320
    %v1322 = vand.u32 %v121, 4294901760
    %1323 = vmatmul.mubr.f32.gmra.mrb[0].mxu0 %v1322
    %v1324 = vpop.f32.mrb[0].mxu0
    %v1325 = vadd.f32 %v1103, %v1324
    %v1326 = vpop.f32.mrb[0].mxu0
    %1327 = vdwg.mxu0
    %1328 = vmatprep.subr.mxu0 0.0
    %v1329 = vand.u32 %v59, 4294901760
    %v1330 = vsub.f32 %v59, %v1329
    %1331 = vmatpush1.msra.mxu0 %v1330
    %1332 = vmatprep.subr.mxu0 0.0
    %v1333 = vand.u32 %v60, 4294901760
    %v1334 = vsub.f32 %v60, %v1333
    %1335 = vmatpush1.msra.mxu0 %v1334
    %1336 = vmatprep.subr.mxu0 0.0
    %v1337 = vand.u32 %v61, 4294901760
    %v1338 = vsub.f32 %v61, %v1337
    %1339 = vmatpush1.msra.mxu0 %v1338
    %1340 = vmatprep.subr.mxu0 0.0
    %v1341 = vand.u32 %v62, 4294901760
    %v1342 = vsub.f32 %v62, %v1341
    %1343 = vmatpush1.msra.mxu0 %v1342
    %1344 = vmatprep.subr.mxu0 0.0
    %v1345 = vand.u32 %v63, 4294901760
    %v1346 = vsub.f32 %v63, %v1345
    %1347 = vmatpush1.msra.mxu0 %v1346
    %1348 = vmatprep.subr.mxu0 0.0
    %v1349 = vand.u32 %v64, 4294901760
    %v1350 = vsub.f32 %v64, %v1349
    %1351 = vmatpush1.msra.mxu0 %v1350
    %1352 = vmatprep.subr.mxu0 0.0
    %v1353 = vand.u32 %v65, 4294901760
    %v1354 = vsub.f32 %v65, %v1353
    %1355 = vmatpush1.msra.mxu0 %v1354
    %1356 = vmatprep.subr.mxu0 0.0
    %v1357 = vand.u32 %v66, 4294901760
    %v1358 = vsub.f32 %v66, %v1357
    %1359 = vmatpush1.msra.mxu0 %v1358
    %1360 = vmatprep.subr.mxu0 0.0
    %v1361 = vand.u32 %v67, 4294901760
    %v1362 = vsub.f32 %v67, %v1361
    %1363 = vmatpush1.msra.mxu0 %v1362
    %1364 = vmatprep.subr.mxu0 0.0
    %v1365 = vand.u32 %v68, 4294901760
    %v1366 = vsub.f32 %v68, %v1365
    %1367 = vmatpush1.msra.mxu0 %v1366
    %1368 = vmatprep.subr.mxu0 0.0
    %v1369 = vand.u32 %v69, 4294901760
    %v1370 = vsub.f32 %v69, %v1369
    %1371 = vmatpush1.msra.mxu0 %v1370
    %1372 = vmatprep.subr.mxu0 0.0
    %v1373 = vand.u32 %v70, 4294901760
    %v1374 = vsub.f32 %v70, %v1373
    %1375 = vmatpush1.msra.mxu0 %v1374
    %1376 = vmatprep.subr.mxu0 0.0
    %v1377 = vand.u32 %v71, 4294901760
    %v1378 = vsub.f32 %v71, %v1377
    %1379 = vmatpush1.msra.mxu0 %v1378
    %1380 = vmatprep.subr.mxu0 0.0
    %v1381 = vand.u32 %v72, 4294901760
    %v1382 = vsub.f32 %v72, %v1381
    %1383 = vmatpush1.msra.mxu0 %v1382
    %1384 = vmatprep.subr.mxu0 0.0
    %v1385 = vand.u32 %v73, 4294901760
    %v1386 = vsub.f32 %v73, %v1385
    %1387 = vmatpush1.msra.mxu0 %v1386
    %1388 = vmatprep.subr.mxu0 0.0
    %v1389 = vand.u32 %v74, 4294901760
    %v1390 = vsub.f32 %v74, %v1389
    %1391 = vmatpush1.msra.mxu0 %v1390
    %1392 = vmatprep.subr.mxu0 0.0
    %v1393 = vand.u32 %v75, 4294901760
    %v1394 = vsub.f32 %v75, %v1393
    %1395 = vmatpush1.msra.mxu0 %v1394
    %1396 = vmatprep.subr.mxu0 0.0
    %v1397 = vand.u32 %v76, 4294901760
    %v1398 = vsub.f32 %v76, %v1397
    %1399 = vmatpush1.msra.mxu0 %v1398
    %1400 = vmatprep.subr.mxu0 0.0
    %v1401 = vand.u32 %v77, 4294901760
    %v1402 = vsub.f32 %v77, %v1401
    %1403 = vmatpush1.msra.mxu0 %v1402
    %1404 = vmatprep.subr.mxu0 0.0
    %v1405 = vand.u32 %v78, 4294901760
    %v1406 = vsub.f32 %v78, %v1405
    %1407 = vmatpush1.msra.mxu0 %v1406
    %1408 = vmatprep.subr.mxu0 0.0
    %v1409 = vand.u32 %v79, 4294901760
    %v1410 = vsub.f32 %v79, %v1409
    %1411 = vmatpush1.msra.mxu0 %v1410
    %1412 = vmatprep.subr.mxu0 0.0
    %v1413 = vand.u32 %v80, 4294901760
    %v1414 = vsub.f32 %v80, %v1413
    %1415 = vmatpush1.msra.mxu0 %v1414
    %1416 = vmatprep.subr.mxu0 0.0
    %v1417 = vand.u32 %v81, 4294901760
    %v1418 = vsub.f32 %v81, %v1417
    %1419 = vmatpush1.msra.mxu0 %v1418
    %1420 = vmatprep.subr.mxu0 0.0
    %v1421 = vand.u32 %v82, 4294901760
    %v1422 = vsub.f32 %v82, %v1421
    %1423 = vmatpush1.msra.mxu0 %v1422
    %1424 = vmatprep.subr.mxu0 0.0
    %v1425 = vand.u32 %v83, 4294901760
    %v1426 = vsub.f32 %v83, %v1425
    %1427 = vmatpush1.msra.mxu0 %v1426
    %1428 = vmatprep.subr.mxu0 0.0
    %v1429 = vand.u32 %v84, 4294901760
    %v1430 = vsub.f32 %v84, %v1429
    %1431 = vmatpush1.msra.mxu0 %v1430
    %1432 = vmatprep.subr.mxu0 0.0
    %v1433 = vand.u32 %v85, 4294901760
    %v1434 = vsub.f32 %v85, %v1433
    %1435 = vmatpush1.msra.mxu0 %v1434
    %1436 = vmatprep.subr.mxu0 0.0
    %v1437 = vand.u32 %v86, 4294901760
    %v1438 = vsub.f32 %v86, %v1437
    %1439 = vmatpush1.msra.mxu0 %v1438
    %1440 = vmatprep.subr.mxu0 0.0
    %v1441 = vand.u32 %v87, 4294901760
    %v1442 = vsub.f32 %v87, %v1441
    %1443 = vmatpush1.msra.mxu0 %v1442
    %1444 = vmatprep.subr.mxu0 0.0
    %v1445 = vand.u32 %v132, 4294901760
    %v1446 = vsub.f32 %v132, %v1445
    %1447 = vmatpush1.msra.mxu0 %v1446
    %1448 = vmatprep.subr.mxu0 0.0
    %1449 = vmatpush1.msra.mxu0 0.0
    %1450 = vmatprep.subr.mxu0 0.0
    %1451 = vmatpush1.msra.mxu0 0.0
    %v1452 = vand.u32 %v128, 4294901760
    %v1453 = vsub.f32 %v128, %v1452
    %1454 = vmatprep.mubr.f32.mxu0 %v1453
    %v1455 = vand.u32 %v121, 4294901760
    %v1456 = vsub.f32 %v121, %v1455
    %1457 = vmatmul.mubr.f32.gmra.mrb[0].mxu0 %v1456
    %v1458 = vpop.f32.mrb[0].mxu0
    %v1459 = vadd.f32 %v1325, %v1458
    %v1460 = vpop.f32.mrb[0].mxu0
    %1461 = vdwg.mxu0
    %1462 = vmatprep.subr.mxu0 0.0
    %v1463 = vand.u32 %v59, 4294901760
    %1464 = vmatpush1.msra.mxu0 %v1463
    %1465 = vmatprep.subr.mxu0 0.0
    %v1466 = vand.u32 %v60, 4294901760
    %1467 = vmatpush1.msra.mxu0 %v1466
    %1468 = vmatprep.subr.mxu0 0.0
    %v1469 = vand.u32 %v61, 4294901760
    %1470 = vmatpush1.msra.mxu0 %v1469
    %1471 = vmatprep.subr.mxu0 0.0
    %v1472 = vand.u32 %v62, 4294901760
    %1473 = vmatpush1.msra.mxu0 %v1472
    %1474 = vmatprep.subr.mxu0 0.0
    %v1475 = vand.u32 %v63, 4294901760
    %1476 = vmatpush1.msra.mxu0 %v1475
    %1477 = vmatprep.subr.mxu0 0.0
    %v1478 = vand.u32 %v64, 4294901760
    %1479 = vmatpush1.msra.mxu0 %v1478
    %1480 = vmatprep.subr.mxu0 0.0
    %v1481 = vand.u32 %v65, 4294901760
    %1482 = vmatpush1.msra.mxu0 %v1481
    %1483 = vmatprep.subr.mxu0 0.0
    %v1484 = vand.u32 %v66, 4294901760
    %1485 = vmatpush1.msra.mxu0 %v1484
    %1486 = vmatprep.subr.mxu0 0.0
    %v1487 = vand.u32 %v67, 4294901760
    %1488 = vmatpush1.msra.mxu0 %v1487
    %1489 = vmatprep.subr.mxu0 0.0
    %v1490 = vand.u32 %v68, 4294901760
    %1491 = vmatpush1.msra.mxu0 %v1490
    %1492 = vmatprep.subr.mxu0 0.0
    %v1493 = vand.u32 %v69, 4294901760
    %1494 = vmatpush1.msra.mxu0 %v1493
    %1495 = vmatprep.subr.mxu0 0.0
    %v1496 = vand.u32 %v70, 4294901760
    %1497 = vmatpush1.msra.mxu0 %v1496
    %1498 = vmatprep.subr.mxu0 0.0
    %v1499 = vand.u32 %v71, 4294901760
    %1500 = vmatpush1.msra.mxu0 %v1499
    %1501 = vmatprep.subr.mxu0 0.0
    %v1502 = vand.u32 %v72, 4294901760
    %1503 = vmatpush1.msra.mxu0 %v1502
    %1504 = vmatprep.subr.mxu0 0.0
    %v1505 = vand.u32 %v73, 4294901760
    %1506 = vmatpush1.msra.mxu0 %v1505
    %1507 = vmatprep.subr.mxu0 0.0
    %v1508 = vand.u32 %v74, 4294901760
    %1509 = vmatpush1.msra.mxu0 %v1508
    %1510 = vmatprep.subr.mxu0 0.0
    %v1511 = vand.u32 %v75, 4294901760
    %1512 = vmatpush1.msra.mxu0 %v1511
    %1513 = vmatprep.subr.mxu0 0.0
    %v1514 = vand.u32 %v76, 4294901760
    %1515 = vmatpush1.msra.mxu0 %v1514
    %1516 = vmatprep.subr.mxu0 0.0
    %v1517 = vand.u32 %v77, 4294901760
    %1518 = vmatpush1.msra.mxu0 %v1517
    %1519 = vmatprep.subr.mxu0 0.0
    %v1520 = vand.u32 %v78, 4294901760
    %1521 = vmatpush1.msra.mxu0 %v1520
    %1522 = vmatprep.subr.mxu0 0.0
    %v1523 = vand.u32 %v79, 4294901760
    %1524 = vmatpush1.msra.mxu0 %v1523
    %1525 = vmatprep.subr.mxu0 0.0
    %v1526 = vand.u32 %v80, 4294901760
    %1527 = vmatpush1.msra.mxu0 %v1526
    %1528 = vmatprep.subr.mxu0 0.0
    %v1529 = vand.u32 %v81, 4294901760
    %1530 = vmatpush1.msra.mxu0 %v1529
    %1531 = vmatprep.subr.mxu0 0.0
    %v1532 = vand.u32 %v82, 4294901760
    %1533 = vmatpush1.msra.mxu0 %v1532
    %1534 = vmatprep.subr.mxu0 0.0
    %v1535 = vand.u32 %v83, 4294901760
    %1536 = vmatpush1.msra.mxu0 %v1535
    %1537 = vmatprep.subr.mxu0 0.0
    %v1538 = vand.u32 %v84, 4294901760
    %1539 = vmatpush1.msra.mxu0 %v1538
    %1540 = vmatprep.subr.mxu0 0.0
    %v1541 = vand.u32 %v85, 4294901760
    %1542 = vmatpush1.msra.mxu0 %v1541
    %1543 = vmatprep.subr.mxu0 0.0
    %v1544 = vand.u32 %v86, 4294901760
    %1545 = vmatpush1.msra.mxu0 %v1544
    %1546 = vmatprep.subr.mxu0 0.0
    %v1547 = vand.u32 %v87, 4294901760
    %1548 = vmatpush1.msra.mxu0 %v1547
    %1549 = vmatprep.subr.mxu0 0.0
    %v1550 = vand.u32 %v132, 4294901760
    %1551 = vmatpush1.msra.mxu0 %v1550
    %1552 = vmatprep.subr.mxu0 0.0
    %1553 = vmatpush1.msra.mxu0 0.0
    %1554 = vmatprep.subr.mxu0 0.0
    %1555 = vmatpush1.msra.mxu0 0.0
    %v1556 = vand.u32 %v128, 4294901760
    %v1557 = vsub.f32 %v128, %v1556
    %v1558 = vand.u32 %v1557, 4294901760
    %1559 = vmatprep.mubr.f32.mxu0 %v1558
    %v1560 = vand.u32 %v121, 4294901760
    %v1561 = vsub.f32 %v121, %v1560
    %v1562 = vand.u32 %v1561, 4294901760
    %1563 = vmatmul.mubr.f32.gmra.mrb[0].mxu0 %v1562
    %v1564 = vpop.f32.mrb[0].mxu0
    %v1565 = vadd.f32 %v1459, %v1564
    %v1566 = vpop.f32.mrb[0].mxu0
    %1567 = vdwg.mxu0
    %1568 = vmatprep.subr.mxu0 0.0
    %v1569 = vand.u32 %v59, 4294901760
    %v1570 = vsub.f32 %v59, %v1569
    %v1571 = vand.u32 %v1570, 4294901760
    %1572 = vmatpush1.msra.mxu0 %v1571
    %1573 = vmatprep.subr.mxu0 0.0
    %v1574 = vand.u32 %v60, 4294901760
    %v1575 = vsub.f32 %v60, %v1574
    %v1576 = vand.u32 %v1575, 4294901760
    %1577 = vmatpush1.msra.mxu0 %v1576
    %1578 = vmatprep.subr.mxu0 0.0
    %v1579 = vand.u32 %v61, 4294901760
    %v1580 = vsub.f32 %v61, %v1579
    %v1581 = vand.u32 %v1580, 4294901760
    %1582 = vmatpush1.msra.mxu0 %v1581
    %1583 = vmatprep.subr.mxu0 0.0
    %v1584 = vand.u32 %v62, 4294901760
    %v1585 = vsub.f32 %v62, %v1584
    %v1586 = vand.u32 %v1585, 4294901760
    %1587 = vmatpush1.msra.mxu0 %v1586
    %1588 = vmatprep.subr.mxu0 0.0
    %v1589 = vand.u32 %v63, 4294901760
    %v1590 = vsub.f32 %v63, %v1589
    %v1591 = vand.u32 %v1590, 4294901760
    %1592 = vmatpush1.msra.mxu0 %v1591
    %1593 = vmatprep.subr.mxu0 0.0
    %v1594 = vand.u32 %v64, 4294901760
    %v1595 = vsub.f32 %v64, %v1594
    %v1596 = vand.u32 %v1595, 4294901760
    %1597 = vmatpush1.msra.mxu0 %v1596
    %1598 = vmatprep.subr.mxu0 0.0
    %v1599 = vand.u32 %v65, 4294901760
    %v1600 = vsub.f32 %v65, %v1599
    %v1601 = vand.u32 %v1600, 4294901760
    %1602 = vmatpush1.msra.mxu0 %v1601
    %1603 = vmatprep.subr.mxu0 0.0
    %v1604 = vand.u32 %v66, 4294901760
    %v1605 = vsub.f32 %v66, %v1604
    %v1606 = vand.u32 %v1605, 4294901760
    %1607 = vmatpush1.msra.mxu0 %v1606
    %1608 = vmatprep.subr.mxu0 0.0
    %v1609 = vand.u32 %v67, 4294901760
    %v1610 = vsub.f32 %v67, %v1609
    %v1611 = vand.u32 %v1610, 4294901760
    %1612 = vmatpush1.msra.mxu0 %v1611
    %1613 = vmatprep.subr.mxu0 0.0
    %v1614 = vand.u32 %v68, 4294901760
    %v1615 = vsub.f32 %v68, %v1614
    %v1616 = vand.u32 %v1615, 4294901760
    %1617 = vmatpush1.msra.mxu0 %v1616
    %1618 = vmatprep.subr.mxu0 0.0
    %v1619 = vand.u32 %v69, 4294901760
    %v1620 = vsub.f32 %v69, %v1619
    %v1621 = vand.u32 %v1620, 4294901760
    %1622 = vmatpush1.msra.mxu0 %v1621
    %1623 = vmatprep.subr.mxu0 0.0
    %v1624 = vand.u32 %v70, 4294901760
    %v1625 = vsub.f32 %v70, %v1624
    %v1626 = vand.u32 %v1625, 4294901760
    %1627 = vmatpush1.msra.mxu0 %v1626
    %1628 = vmatprep.subr.mxu0 0.0
    %v1629 = vand.u32 %v71, 4294901760
    %v1630 = vsub.f32 %v71, %v1629
    %v1631 = vand.u32 %v1630, 4294901760
    %1632 = vmatpush1.msra.mxu0 %v1631
    %1633 = vmatprep.subr.mxu0 0.0
    %v1634 = vand.u32 %v72, 4294901760
    %v1635 = vsub.f32 %v72, %v1634
    %v1636 = vand.u32 %v1635, 4294901760
    %1637 = vmatpush1.msra.mxu0 %v1636
    %1638 = vmatprep.subr.mxu0 0.0
    %v1639 = vand.u32 %v73, 4294901760
    %v1640 = vsub.f32 %v73, %v1639
    %v1641 = vand.u32 %v1640, 4294901760
    %1642 = vmatpush1.msra.mxu0 %v1641
    %1643 = vmatprep.subr.mxu0 0.0
    %v1644 = vand.u32 %v74, 4294901760
    %v1645 = vsub.f32 %v74, %v1644
    %v1646 = vand.u32 %v1645, 4294901760
    %1647 = vmatpush1.msra.mxu0 %v1646
    %1648 = vmatprep.subr.mxu0 0.0
    %v1649 = vand.u32 %v75, 4294901760
    %v1650 = vsub.f32 %v75, %v1649
    %v1651 = vand.u32 %v1650, 4294901760
    %1652 = vmatpush1.msra.mxu0 %v1651
    %1653 = vmatprep.subr.mxu0 0.0
    %v1654 = vand.u32 %v76, 4294901760
    %v1655 = vsub.f32 %v76, %v1654
    %v1656 = vand.u32 %v1655, 4294901760
    %1657 = vmatpush1.msra.mxu0 %v1656
    %1658 = vmatprep.subr.mxu0 0.0
    %v1659 = vand.u32 %v77, 4294901760
    %v1660 = vsub.f32 %v77, %v1659
    %v1661 = vand.u32 %v1660, 4294901760
    %1662 = vmatpush1.msra.mxu0 %v1661
    %1663 = vmatprep.subr.mxu0 0.0
    %v1664 = vand.u32 %v78, 4294901760
    %v1665 = vsub.f32 %v78, %v1664
    %v1666 = vand.u32 %v1665, 4294901760
    %1667 = vmatpush1.msra.mxu0 %v1666
    %1668 = vmatprep.subr.mxu0 0.0
    %v1669 = vand.u32 %v79, 4294901760
    %v1670 = vsub.f32 %v79, %v1669
    %v1671 = vand.u32 %v1670, 4294901760
    %1672 = vmatpush1.msra.mxu0 %v1671
    %1673 = vmatprep.subr.mxu0 0.0
    %v1674 = vand.u32 %v80, 4294901760
    %v1675 = vsub.f32 %v80, %v1674
    %v1676 = vand.u32 %v1675, 4294901760
    %1677 = vmatpush1.msra.mxu0 %v1676
    %1678 = vmatprep.subr.mxu0 0.0
    %v1679 = vand.u32 %v81, 4294901760
    %v1680 = vsub.f32 %v81, %v1679
    %v1681 = vand.u32 %v1680, 4294901760
    %1682 = vmatpush1.msra.mxu0 %v1681
    %1683 = vmatprep.subr.mxu0 0.0
    %v1684 = vand.u32 %v82, 4294901760
    %v1685 = vsub.f32 %v82, %v1684
    %v1686 = vand.u32 %v1685, 4294901760
    %1687 = vmatpush1.msra.mxu0 %v1686
    %1688 = vmatprep.subr.mxu0 0.0
    %v1689 = vand.u32 %v83, 4294901760
    %v1690 = vsub.f32 %v83, %v1689
    %v1691 = vand.u32 %v1690, 4294901760
    %1692 = vmatpush1.msra.mxu0 %v1691
    %1693 = vmatprep.subr.mxu0 0.0
    %v1694 = vand.u32 %v84, 4294901760
    %v1695 = vsub.f32 %v84, %v1694
    %v1696 = vand.u32 %v1695, 4294901760
    %1697 = vmatpush1.msra.mxu0 %v1696
    %1698 = vmatprep.subr.mxu0 0.0
    %v1699 = vand.u32 %v85, 4294901760
    %v1700 = vsub.f32 %v85, %v1699
    %v1701 = vand.u32 %v1700, 4294901760
    %1702 = vmatpush1.msra.mxu0 %v1701
    %1703 = vmatprep.subr.mxu0 0.0
    %v1704 = vand.u32 %v86, 4294901760
    %v1705 = vsub.f32 %v86, %v1704
    %v1706 = vand.u32 %v1705, 4294901760
    %1707 = vmatpush1.msra.mxu0 %v1706
    %1708 = vmatprep.subr.mxu0 0.0
    %v1709 = vand.u32 %v87, 4294901760
    %v1710 = vsub.f32 %v87, %v1709
    %v1711 = vand.u32 %v1710, 4294901760
    %1712 = vmatpush1.msra.mxu0 %v1711
    %1713 = vmatprep.subr.mxu0 0.0
    %v1714 = vand.u32 %v132, 4294901760
    %v1715 = vsub.f32 %v132, %v1714
    %v1716 = vand.u32 %v1715, 4294901760
    %1717 = vmatpush1.msra.mxu0 %v1716
    %1718 = vmatprep.subr.mxu0 0.0
    %1719 = vmatpush1.msra.mxu0 0.0
    %1720 = vmatprep.subr.mxu0 0.0
    %1721 = vmatpush1.msra.mxu0 0.0
    %v1722 = vand.u32 %v128, 4294901760
    %1723 = vmatprep.mubr.f32.mxu0 %v1722
    %v1724 = vand.u32 %v121, 4294901760
    %1725 = vmatmul.mubr.f32.gmra.mrb[0].mxu0 %v1724
    %v1726 = vpop.f32.mrb[0].mxu0
    %v1727 = vadd.f32 %v1565, %v1726
    %v1728 = vpop.f32.mrb[0].mxu0
    %1729 = vdwg.mxu0
    %1730 = vmatprep.subr.mxu0 0.0
    %v1731 = vand.u32 %v59, 4294901760
    %1732 = vmatpush1.msra.mxu0 %v1731
    %1733 = vmatprep.subr.mxu0 0.0
    %v1734 = vand.u32 %v60, 4294901760
    %1735 = vmatpush1.msra.mxu0 %v1734
    %1736 = vmatprep.subr.mxu0 0.0
    %v1737 = vand.u32 %v61, 4294901760
    %1738 = vmatpush1.msra.mxu0 %v1737
    %1739 = vmatprep.subr.mxu0 0.0
    %v1740 = vand.u32 %v62, 4294901760
    %1741 = vmatpush1.msra.mxu0 %v1740
    %1742 = vmatprep.subr.mxu0 0.0
    %v1743 = vand.u32 %v63, 4294901760
    %1744 = vmatpush1.msra.mxu0 %v1743
    %1745 = vmatprep.subr.mxu0 0.0
    %v1746 = vand.u32 %v64, 4294901760
    %1747 = vmatpush1.msra.mxu0 %v1746
    %1748 = vmatprep.subr.mxu0 0.0
    %v1749 = vand.u32 %v65, 4294901760
    %1750 = vmatpush1.msra.mxu0 %v1749
    %1751 = vmatprep.subr.mxu0 0.0
    %v1752 = vand.u32 %v66, 4294901760
    %1753 = vmatpush1.msra.mxu0 %v1752
    %1754 = vmatprep.subr.mxu0 0.0
    %v1755 = vand.u32 %v67, 4294901760
    %1756 = vmatpush1.msra.mxu0 %v1755
    %1757 = vmatprep.subr.mxu0 0.0
    %v1758 = vand.u32 %v68, 4294901760
    %1759 = vmatpush1.msra.mxu0 %v1758
    %1760 = vmatprep.subr.mxu0 0.0
    %v1761 = vand.u32 %v69, 4294901760
    %1762 = vmatpush1.msra.mxu0 %v1761
    %1763 = vmatprep.subr.mxu0 0.0
    %v1764 = vand.u32 %v70, 4294901760
    %1765 = vmatpush1.msra.mxu0 %v1764
    %1766 = vmatprep.subr.mxu0 0.0
    %v1767 = vand.u32 %v71, 4294901760
    %1768 = vmatpush1.msra.mxu0 %v1767
    %1769 = vmatprep.subr.mxu0 0.0
    %v1770 = vand.u32 %v72, 4294901760
    %1771 = vmatpush1.msra.mxu0 %v1770
    %1772 = vmatprep.subr.mxu0 0.0
    %v1773 = vand.u32 %v73, 4294901760
    %1774 = vmatpush1.msra.mxu0 %v1773
    %1775 = vmatprep.subr.mxu0 0.0
    %v1776 = vand.u32 %v74, 4294901760
    %1777 = vmatpush1.msra.mxu0 %v1776
    %1778 = vmatprep.subr.mxu0 0.0
    %v1779 = vand.u32 %v75, 4294901760
    %1780 = vmatpush1.msra.mxu0 %v1779
    %1781 = vmatprep.subr.mxu0 0.0
    %v1782 = vand.u32 %v76, 4294901760
    %1783 = vmatpush1.msra.mxu0 %v1782
    %1784 = vmatprep.subr.mxu0 0.0
    %v1785 = vand.u32 %v77, 4294901760
    %1786 = vmatpush1.msra.mxu0 %v1785
    %1787 = vmatprep.subr.mxu0 0.0
    %v1788 = vand.u32 %v78, 4294901760
    %1789 = vmatpush1.msra.mxu0 %v1788
    %1790 = vmatprep.subr.mxu0 0.0
    %v1791 = vand.u32 %v79, 4294901760
    %1792 = vmatpush1.msra.mxu0 %v1791
    %1793 = vmatprep.subr.mxu0 0.0
    %v1794 = vand.u32 %v80, 4294901760
    %1795 = vmatpush1.msra.mxu0 %v1794
    %1796 = vmatprep.subr.mxu0 0.0
    %v1797 = vand.u32 %v81, 4294901760
    %1798 = vmatpush1.msra.mxu0 %v1797
    %1799 = vmatprep.subr.mxu0 0.0
    %v1800 = vand.u32 %v82, 4294901760
    %1801 = vmatpush1.msra.mxu0 %v1800
    %1802 = vmatprep.subr.mxu0 0.0
    %v1803 = vand.u32 %v83, 4294901760
    %1804 = vmatpush1.msra.mxu0 %v1803
    %1805 = vmatprep.subr.mxu0 0.0
    %v1806 = vand.u32 %v84, 4294901760
    %1807 = vmatpush1.msra.mxu0 %v1806
    %1808 = vmatprep.subr.mxu0 0.0
    %v1809 = vand.u32 %v85, 4294901760
    %1810 = vmatpush1.msra.mxu0 %v1809
    %1811 = vmatprep.subr.mxu0 0.0
    %v1812 = vand.u32 %v86, 4294901760
    %1813 = vmatpush1.msra.mxu0 %v1812
    %1814 = vmatprep.subr.mxu0 0.0
    %v1815 = vand.u32 %v87, 4294901760
    %1816 = vmatpush1.msra.mxu0 %v1815
    %1817 = vmatprep.subr.mxu0 0.0
    %v1818 = vand.u32 %v132, 4294901760
    %1819 = vmatpush1.msra.mxu0 %v1818
    %1820 = vmatprep.subr.mxu0 0.0
    %1821 = vmatpush1.msra.mxu0 0.0
    %1822 = vmatprep.subr.mxu0 0.0
    %1823 = vmatpush1.msra.mxu0 0.0
    %v1824 = vand.u32 %v128, 4294901760
    %1825 = vmatprep.mubr.f32.mxu0 %v1824
    %v1826 = vand.u32 %v121, 4294901760
    %1827 = vmatmul.mubr.f32.gmra.mrb[0].mxu0 %v1826
    %v1828 = vpop.f32.mrb[0].mxu0
    %v1829 = vadd.f32 %v1727, %v1828
    %v1830 = vpop.f32.mrb[0].mxu0
    %1831 = vdwg.mxu0
    %1832 = vst [vmem:[%s2] sm:$0xf] %v1829
    // Predicated region
    $region14: #{pool2x2.1} parent=1 // pred_check
      _
    $region15: #{pool2x2.1} parent=1 // pred_check_branch
      %1834 = sbr.rel (0) target = $region17
    $region16: #{pool2x2.1} parent=1 // pred_region
      _
    $region17: #{pool2x2.1} parent=1 // pred_fallthru
      _
    // Predicated region
    $region18: #{pool2x2.1} parent=1 // pred_check
      _
    $region19: #{pool2x2.1} parent=1 // pred_check_branch
      %1836 = sbr.rel (0) target = $region21
    $region20: #{pool2x2.1} parent=1 // pred_region
      _
    $region21: #{pool2x2.1} parent=1 // pred_fallthru
      _
    %1837 = vsyncpa [#allocation3], 1

</llo_original>
